<compile_context>
chip_gen: v7x
topology: tpu7x:2x2x1
jax: 0.10.0
libtpu: 0.0.40
codegen_flags: <defaults>
</compile_context>

<pallas_src>
import math

import jax
import jax.numpy as jnp
from jax.experimental import pallas as pl
from jax.experimental.pallas import tpu as pltpu


def _round_up(x, m):
    return ((x + m - 1) // m) * m


def _device_vmem_bytes():
    """Per-TensorCore VMEM capacity in bytes (conservative fallback 64 MiB)."""
    try:
        return int(pltpu.get_tpu_info().vmem_capacity_bytes)
    except Exception:
        pass
    try:
        kind = jax.devices()[0].device_kind.lower()
        if "v7" in kind:
            return 64 * 1024 * 1024
        if "v5" in kind or "v6" in kind:
            return 128 * 1024 * 1024
    except Exception:
        pass
    return 64 * 1024 * 1024


def ffnn_kernel(x_ref, w1t_ref, b1_ref, w2_ref, b2_ref, out_ref, acc_ref):
    # x_ref:   (tb, tk)  batch tile, K-slice            (compute dtype)
    # w1t_ref: (tk, D)   fc_1.weight^T K-slab           (compute dtype)
    # b1_ref:  (1, D)    fc_1.bias                      (f32, VMEM)
    # w2_ref:  (1, D)    fc_2.weight row                (f32, VMEM)
    # b2_ref:  (1, 1)    fc_2.bias                      (f32, SMEM scalar)
    # out_ref: (1, tb)   lane-dense logits for this batch tile
    # acc_ref: (tb, D)   f32 accumulator (VMEM scratch)
    k = pl.program_id(1)

    @pl.when(k == 0)
    def _init():
        acc_ref[...] = jnp.zeros_like(acc_ref)

    # Accumulate x @ W1^T (W1 pre-transposed outside -> straight MXU GEMM).
    acc_ref[...] += jnp.dot(
        x_ref[...], w1t_ref[...], preferred_element_type=jnp.float32
    )

    @pl.when(k == pl.num_programs(1) - 1)
    def _finalize():
        tb, d_full = acc_ref.shape
        chunk = min(512, d_full)
        logits = jnp.zeros((tb,), jnp.float32)
        d = 0
        while d < d_full:  # static (trace-time) loop over <=512-lane slices
            c = min(chunk, d_full - d)
            h = jnp.maximum(acc_ref[:, d:d + c] + b1_ref[:, d:d + c], 0.0)
            # fc_2 (out width 1): VPU multiply + lane reduction (MXU stays free).
            logits = logits + jnp.sum(h * w2_ref[:, d:d + c], axis=-1)
            d += c
        logits = logits + b2_ref[0, 0]
        out_ref[...] = logits.reshape(1, -1).astype(out_ref.dtype)


def ffnn_forward(x, w1, b1, w2, b2, *, tb=None, tk=None, compute_dtype=None,
                 single_buffer_resident=None, use_pipeline_hints=True):
    """logits = (relu(x @ W1^T + b1) @ W2^T + b2).squeeze(-1), shape (B,).

    compute_dtype defaults to bfloat16 (MXU-native); pass jnp.float32 for
    bit-tighter numerics.  Accumulation is always f32.
    """
    B, D = x.shape
    assert w1.shape == (D, D) and b1.shape == (D,)
    assert w2.shape == (1, D) and b2.shape == (1,)
    out_dtype = x.dtype

    cdtype = (jnp.dtype(compute_dtype) if compute_dtype is not None
              else jnp.dtype(jnp.bfloat16))
    isz = cdtype.itemsize

    # ---- VMEM-aware tiling (budget is per-TensorCore -> megacore safe) -----
    vmem_cap = _device_vmem_bytes()
    budget = int(0.80 * vmem_cap)
    w1_bytes = D * D * isz

    if tk is None:
        if w1_bytes <= budget // 2:
            tk = D                                   # W1 fully resident
        else:
            # Stream W1^T over K; double-buffered slab gets ~1/3 of the budget.
            tk = (budget // 3) // max(1, 2 * D * isz)
            tk = max(128, (tk // 128) * 128)
            tk = min(tk, _round_up(D, 128))
    tk = int(tk)
    if tk >= D:
        tk = D
        d_k_pad = D                                  # resident: no K padding
    else:
        d_k_pad = _round_up(D, tk)                   # zero-pad contraction dim
    nk = d_k_pad // tk

    if tb is None:
        cap_tb = 512 if nk > 1 else 256              # bigger tile when streaming
        tb = min(cap_tb, _round_up(B, 128))
        # Keep the f32 accumulator + x buffers inside the budget (v7x: 64 MiB).
        while tb > 128 and (tb * D * 4 + 3 * tb * tk * isz) > budget // 3:
            tb //= 2
    tb = max(8, _round_up(int(tb), 8))
    B_pad = _round_up(B, tb)
    num_tiles = B_pad // tb

    # Single-buffer the resident W1^T slab (its block index never changes)
    # when double-buffering it would not comfortably fit (critical on v7x).
    if single_buffer_resident is None:
        single_buffer_resident = (nk == 1) and (w1_bytes > budget // 3)
    single_buffer_resident = bool(single_buffer_resident) and (nk == 1)
    w1_buffers = 1 if single_buffer_resident else 2
    x_buffers = 3 if nk > 1 else 2

    # ---- operand prep ------------------------------------------------------
    x_p = x.astype(cdtype)
    if B_pad != B or d_k_pad != D:
        x_p = jnp.pad(x_p, ((0, B_pad - B), (0, d_k_pad - D)))
    w1t = w1.T.astype(cdtype)                        # (D_in, D_out): no in-kernel .T
    if d_k_pad != D:
        w1t = jnp.pad(w1t, ((0, d_k_pad - D), (0, 0)))
    b1_2d = b1.reshape(1, D).astype(jnp.float32)
    w2_2d = w2.reshape(1, D).astype(jnp.float32)
    b2_2d = b2.reshape(1, 1).astype(jnp.float32)

    # ---- VMEM limit: explicit (v5e scoped default is 16 MiB) but never above
    # the physical per-TC capacity (v7x: 64 MiB).
    est = (x_buffers * tb * tk * isz
           + w1_buffers * tk * D * isz
           + 2 * 2 * D * 4              # b1, w2 rows
           + tb * D * 4                 # f32 accumulator scratch
           + 2 * tb * 4)                # output tile
    vmem_limit = int(min(max(int(1.25 * est), 32 * 1024 * 1024),
                         int(0.90 * vmem_cap)))

    def _spec(shape, index_map, buffers=None):
        if use_pipeline_hints and buffers is not None and buffers != 2:
            try:
                return pl.BlockSpec(shape, index_map,
                                    pipeline_mode=pl.Buffered(buffers))
            except Exception:
                pass  # older Pallas without pipeline_mode: fall back silently
        return pl.BlockSpec(shape, index_map)

    in_specs = [
        _spec((tb, tk), lambda i, k: (i, k), x_buffers),        # x tile streams
        _spec((tk, D), lambda i, k: (k, 0), w1_buffers),        # W1^T slab
        _spec((1, D), lambda i, k: (0, 0),
              1 if single_buffer_resident else None),           # b1 (resident)
        _spec((1, D), lambda i, k: (0, 0),
              1 if single_buffer_resident else None),           # W2 row (resident)
        pl.BlockSpec(memory_space=pltpu.MemorySpace.SMEM),      # b2 scalar
    ]

    out = pl.pallas_call(
        ffnn_kernel,
        out_shape=jax.ShapeDtypeStruct((num_tiles, tb), out_dtype),
        grid_spec=pltpu.PrefetchScalarGridSpec(
            num_scalar_prefetch=0,
            grid=(num_tiles, nk),                               # reduction axis last
            in_specs=in_specs,
            out_specs=pl.BlockSpec((1, tb), lambda i, k: (i, 0)),
            scratch_shapes=[pltpu.VMEM((tb, D), jnp.float32)],
        ),
        compiler_params=pltpu.CompilerParams(
            dimension_semantics=("parallel", "arbitrary"),
            vmem_limit_bytes=vmem_limit,
        ),
    )(x_p, w1t, b1_2d, w2_2d, b2_2d)

    return out.reshape(-1)[:B]


def init_params(key, in_size, dtype=jnp.float32):
    """Deterministic init mirroring the PyTorch module's shapes.

    fc_1.weight: (in_size, in_size) xavier_uniform
    fc_1.bias:   (in_size,)         uniform(-1/sqrt(in_size), +)
    fc_2.weight: (1, in_size)       xavier_uniform
    fc_2.bias:   (1,)               uniform(-1/sqrt(in_size), +)
    """
    k1, k2, k3, k4 = jax.random.split(key, 4)
    bound1 = math.sqrt(6.0 / (in_size + in_size))
    w1 = jax.random.uniform(k1, (in_size, in_size), dtype, -bound1, bound1)
    bb = 1.0 / math.sqrt(in_size)
    b1 = jax.random.uniform(k2, (in_size,), dtype, -bb, bb)
    bound2 = math.sqrt(6.0 / (in_size + 1))
    w2 = jax.random.uniform(k3, (1, in_size), dtype, -bound2, bound2)
    b2 = jax.random.uniform(k4, (1,), dtype, -bb, bb)
    return w1, b1, w2, b2


if __name__ == "__main__":
    key = jax.random.PRNGKey(0)
    kx1, kp1, kx2, kp2 = jax.random.split(key, 4)

    def reference(x, w1, b1, w2, b2):
        h = jnp.maximum(x @ w1.T + b1, 0.0)
        return (h @ w2.T + b2).squeeze(-1)

    def run(x, params, **kw):
        try:
            return ffnn_forward(x, *params, **kw)
        except Exception:
            # Safety net: drop pipeline-buffering hints if this Pallas build
            # rejects them; kernel semantics are identical.
            kw = dict(kw)
            kw["use_pipeline_hints"] = False
            kw["single_buffer_resident"] = False
            return ffnn_forward(x, *params, **kw)

    # --- A: small case, f32 compute, resident W1 (tight tolerance) ----------
    B1, D1 = 8, 32
    x1 = jax.random.normal(kx1, (B1, D1), jnp.float32)
    p1 = init_params(kp1, D1)
    out1 = jax.block_until_ready(run(x1, p1, compute_dtype=jnp.float32))
    ref1 = reference(x1, *p1)
    assert out1.shape == (B1,)
    assert jnp.allclose(out1, ref1, atol=5e-3, rtol=5e-3), \
        f"max err {jnp.max(jnp.abs(out1 - ref1))}"

    # --- B: default bf16 compute, streamed W1^T, K padded (160 -> 256) ------
    # bf16 GEMM inputs are intentional (f32 accumulation); tolerance reflects it.
    B2, D2 = 44, 160
    x2 = jax.random.normal(kx2, (B2, D2), jnp.float32)
    p2 = init_params(kp2, D2)
    out2 = jax.block_until_ready(run(x2, p2, tk=128))
    ref2 = reference(x2, *p2)
    assert out2.shape == (B2,)
    assert jnp.allclose(out2, ref2, atol=3e-2, rtol=3e-2), \
        f"max err {jnp.max(jnp.abs(out2 - ref2))}"

    # --- C: resident W1 with single-buffering forced (v7x VMEM-fit path) ----
    out3 = jax.block_until_ready(run(x1, p1, single_buffer_resident=True))
    assert out3.shape == (B1,)
    assert jnp.allclose(out3, ref1, atol=3e-2, rtol=3e-2), \
        f"max err {jnp.max(jnp.abs(out3 - ref1))}"

    print("KERNEL_OK")
</pallas_src>

<mosaic_0001>
module attributes {stable_mosaic.version = 11 : i64} {
  func.func @ffnn_kernel(%arg0: i32, %arg1: i32, %arg2: memref<128x32xf32, #tpu.memory_space<vmem>>, %arg3: memref<32x32xf32, #tpu.memory_space<vmem>>, %arg4: memref<1x32xf32, #tpu.memory_space<vmem>>, %arg5: memref<1x32xf32, #tpu.memory_space<vmem>>, %arg6: memref<1x1xf32, #tpu.memory_space<smem>>, %arg7: memref<1x128xf32, #tpu.memory_space<vmem>>, %arg8: memref<128x32xf32, #tpu.memory_space<vmem>>) attributes {dimension_semantics = [#tpu.dimension_semantics<parallel>, #tpu.dimension_semantics<arbitrary>], iteration_bounds = array<i64: 1, 1>, scalar_prefetch = 0 : i64, scratch_operands = 1 : i64, tpu.core_type = #tpu.core_type<tc>, window_params = [{transform_indices = @transform_0, window_bounds = array<i64: 128, 32>}, {transform_indices = @transform_1, window_bounds = array<i64: 32, 32>}, {pipeline_mode = #tpu.pipeline_mode<synchronous>, transform_indices = @transform_2, window_bounds = array<i64: 1, 32>}, {pipeline_mode = #tpu.pipeline_mode<synchronous>, transform_indices = @transform_3, window_bounds = array<i64: 1, 32>}, {transform_indices = @transform_4, window_bounds = array<i64: 1, 1>}, {transform_indices = @transform_5, window_bounds = array<i64: 1, 128>}]} {
    %c0_i32 = arith.constant 0 : i32
    %0 = arith.cmpi eq, %arg1, %c0_i32 : i32
    %1 = arith.extui %0 : i1 to i32
    %c0_i32_0 = arith.constant 0 : i32
    %2 = arith.cmpi ne, %1, %c0_i32_0 : i32
    scf.if %2 {
      %cst_10 = arith.constant 0.000000e+00 : f32
      %12 = vector.broadcast %cst_10 : f32 to vector<128x32xf32>
      %c0_11 = arith.constant 0 : index
      %c0_12 = arith.constant 0 : index
      %13 = vector.load %arg8[%c0_11, %c0_12] : memref<128x32xf32, #tpu.memory_space<vmem>>, vector<128x32xf32>
      tpu.vector_store %arg8[%c0_11, %c0_12], %12 {strides = array<i32>} : memref<128x32xf32, #tpu.memory_space<vmem>>, vector<128x32xf32>,
    } else {
    }
    %c0 = arith.constant 0 : index
    %c0_1 = arith.constant 0 : index
    %3 = vector.load %arg8[%c0, %c0_1] : memref<128x32xf32, #tpu.memory_space<vmem>>, vector<128x32xf32>
    %c0_2 = arith.constant 0 : index
    %c0_3 = arith.constant 0 : index
    %4 = vector.load %arg2[%c0_2, %c0_3] : memref<128x32xf32, #tpu.memory_space<vmem>>, vector<128x32xf32>
    %c0_4 = arith.constant 0 : index
    %c0_5 = arith.constant 0 : index
    %5 = vector.load %arg3[%c0_4, %c0_5] : memref<32x32xf32, #tpu.memory_space<vmem>>, vector<32x32xf32>
    %cst = arith.constant dense<0.000000e+00> : vector<128x32xf32>
    %6 = tpu.matmul %4, %5, %cst {dimension_numbers = #tpu.dot_dimension_numbers<[1], [0], [0], [1], [0, 0, 1, 1], [], []>} : vector<128x32xf32>, vector<32x32xf32>, vector<128x32xf32> -> vector<128x32xf32>
    %7 = arith.addf %3, %6 : vector<128x32xf32>
    %c0_6 = arith.constant 0 : index
    %c0_7 = arith.constant 0 : index
    %8 = vector.load %arg8[%c0_6, %c0_7] : memref<128x32xf32, #tpu.memory_space<vmem>>, vector<128x32xf32>
    tpu.vector_store %arg8[%c0_6, %c0_7], %7 {strides = array<i32>} : memref<128x32xf32, #tpu.memory_space<vmem>>, vector<128x32xf32>,
    %c0_i32_8 = arith.constant 0 : i32
    %9 = arith.cmpi eq, %arg1, %c0_i32_8 : i32
    %10 = arith.extui %9 : i1 to i32
    %c0_i32_9 = arith.constant 0 : i32
    %11 = arith.cmpi ne, %10, %c0_i32_9 : i32
    scf.if %11 {
      %cst_10 = arith.constant 0.000000e+00 : f32
      %12 = vector.broadcast %cst_10 : f32 to vector<128xf32>
      %c0_11 = arith.constant 0 : index
      %c0_12 = arith.constant 0 : index
      %13 = vector.load %arg8[%c0_11, %c0_12] : memref<128x32xf32, #tpu.memory_space<vmem>>, vector<128x32xf32>
      %c0_13 = arith.constant 0 : index
      %c0_14 = arith.constant 0 : index
      %14 = vector.load %arg4[%c0_13, %c0_14] : memref<1x32xf32, #tpu.memory_space<vmem>>, vector<1x32xf32>
      %15 = vector.broadcast %14 : vector<1x32xf32> to vector<128x32xf32>
      %16 = arith.addf %13, %15 : vector<128x32xf32>
      %cst_15 = arith.constant 0.000000e+00 : f32
      %17 = vector.broadcast %cst_15 : f32 to vector<128x32xf32>
      %18 = arith.maximumf %16, %17 : vector<128x32xf32>
      %c0_16 = arith.constant 0 : index
      %c0_17 = arith.constant 0 : index
      %19 = vector.load %arg5[%c0_16, %c0_17] : memref<1x32xf32, #tpu.memory_space<vmem>>, vector<1x32xf32>
      %20 = vector.broadcast %19 : vector<1x32xf32> to vector<128x32xf32>
      %21 = arith.mulf %18, %20 : vector<128x32xf32>
      %cst_18 = arith.constant dense<0.000000e+00> : vector<128xf32>
      %22 = vector.multi_reduction <add>, %21, %cst_18 [1] : vector<128x32xf32> to vector<128xf32>
      %23 = arith.addf %12, %22 : vector<128xf32>
      %c0_19 = arith.constant 0 : index
      %c0_20 = arith.constant 0 : index
      %24 = memref.load %arg6[%c0_19, %c0_20] : memref<1x1xf32, #tpu.memory_space<smem>>
      %25 = vector.broadcast %24 : f32 to vector<128xf32>
      %26 = arith.addf %23, %25 : vector<128xf32>
      %27 = vector.shape_cast %26 : vector<128xf32> to vector<1x128xf32>
      %c0_21 = arith.constant 0 : index
      %c0_22 = arith.constant 0 : index
      %28 = vector.load %arg7[%c0_21, %c0_22] : memref<1x128xf32, #tpu.memory_space<vmem>>, vector<1x128xf32>
      tpu.vector_store %arg7[%c0_21, %c0_22], %27 {strides = array<i32>} : memref<1x128xf32, #tpu.memory_space<vmem>>, vector<1x128xf32>,
    } else {
    }
    return
  }
  func.func @transform_0(%arg0: i32, %arg1: i32) -> (i32, i32) {
    %c0_i32 = arith.constant 0 : i32
    return %arg0, %arg1 : i32, i32
  }
  func.func @transform_1(%arg0: i32, %arg1: i32) -> (i32, i32) {
    %c0_i32 = arith.constant 0 : i32
    %c0_i32_0 = arith.constant 0 : i32
    return %arg1, %c0_i32 : i32, i32
  }
  func.func @transform_2(%arg0: i32, %arg1: i32) -> (i32, i32) {
    %c0_i32 = arith.constant 0 : i32
    %c0_i32_0 = arith.constant 0 : i32
    %c0_i32_1 = arith.constant 0 : i32
    return %c0_i32, %c0_i32_0 : i32, i32
  }
  func.func @transform_3(%arg0: i32, %arg1: i32) -> (i32, i32) {
    %c0_i32 = arith.constant 0 : i32
    %c0_i32_0 = arith.constant 0 : i32
    %c0_i32_1 = arith.constant 0 : i32
    return %c0_i32, %c0_i32_0 : i32, i32
  }
  func.func @transform_4(%arg0: i32, %arg1: i32) -> (i32, i32) {
    %c0_i32 = arith.constant 0 : i32
    %c0_i32_0 = arith.constant 0 : i32
    %c0_i32_1 = arith.constant 0 : i32
    return %c0_i32, %c0_i32_0 : i32, i32
  }
  func.func @transform_5(%arg0: i32, %arg1: i32) -> (i32, i32) {
    %c0_i32 = arith.constant 0 : i32
    %c0_i32_0 = arith.constant 0 : i32
    return %arg0, %c0_i32 : i32, i32
  }
}

module attributes {stable_mosaic.version = 11 : i64} {
  func.func @ffnn_kernel(%arg0: i32, %arg1: i32, %arg2: memref<128x32xf32, #tpu.memory_space<vmem>>, %arg3: memref<32x32xf32, #tpu.memory_space<vmem>>, %arg4: memref<1x32xf32, #tpu.memory_space<vmem>>, %arg5: memref<1x32xf32, #tpu.memory_space<vmem>>, %arg6: memref<1x1xf32, #tpu.memory_space<smem>>, %arg7: memref<1x128xf32, #tpu.memory_space<vmem>>, %arg8: memref<128x32xf32, #tpu.memory_space<vmem>>) attributes {dimension_semantics = [#tpu.dimension_semantics<parallel>, #tpu.dimension_semantics<arbitrary>], iteration_bounds = array<i64: 1, 1>, scalar_prefetch = 0 : i64, scratch_operands = 1 : i64, tpu.core_type = #tpu.core_type<tc>, window_params = [{transform_indices = @transform_0, window_bounds = array<i64: 128, 32>}, {transform_indices = @transform_1, window_bounds = array<i64: 32, 32>}, {pipeline_mode = #tpu.pipeline_mode<synchronous>, transform_indices = @transform_2, window_bounds = array<i64: 1, 32>}, {pipeline_mode = #tpu.pipeline_mode<synchronous>, transform_indices = @transform_3, window_bounds = array<i64: 1, 32>}, {transform_indices = @transform_4, window_bounds = array<i64: 1, 1>}, {transform_indices = @transform_5, window_bounds = array<i64: 1, 128>}]} {
    %c0_i32 = arith.constant 0 : i32
    %0 = arith.cmpi eq, %arg1, %c0_i32 : i32
    %1 = arith.extui %0 : i1 to i32
    %c0_i32_0 = arith.constant 0 : i32
    %2 = arith.cmpi ne, %1, %c0_i32_0 : i32
    scf.if %2 {
      %cst_10 = arith.constant 0.000000e+00 : f32
      %12 = vector.broadcast %cst_10 : f32 to vector<128x32xf32>
      %c0_11 = arith.constant 0 : index
      %c0_12 = arith.constant 0 : index
      %13 = vector.load %arg8[%c0_11, %c0_12] : memref<128x32xf32, #tpu.memory_space<vmem>>, vector<128x32xf32>
      tpu.vector_store %arg8[%c0_11, %c0_12], %12 {strides = array<i32>} : memref<128x32xf32, #tpu.memory_space<vmem>>, vector<128x32xf32>,
    } else {
    }
    %c0 = arith.constant 0 : index
    %c0_1 = arith.constant 0 : index
    %3 = vector.load %arg8[%c0, %c0_1] : memref<128x32xf32, #tpu.memory_space<vmem>>, vector<128x32xf32>
    %c0_2 = arith.constant 0 : index
    %c0_3 = arith.constant 0 : index
    %4 = vector.load %arg2[%c0_2, %c0_3] : memref<128x32xf32, #tpu.memory_space<vmem>>, vector<128x32xf32>
    %c0_4 = arith.constant 0 : index
    %c0_5 = arith.constant 0 : index
    %5 = vector.load %arg3[%c0_4, %c0_5] : memref<32x32xf32, #tpu.memory_space<vmem>>, vector<32x32xf32>
    %cst = arith.constant dense<0.000000e+00> : vector<128x32xf32>
    %6 = tpu.matmul %4, %5, %cst {dimension_numbers = #tpu.dot_dimension_numbers<[1], [0], [0], [1], [0, 0, 1, 1], [], []>} : vector<128x32xf32>, vector<32x32xf32>, vector<128x32xf32> -> vector<128x32xf32>
    %7 = arith.addf %3, %6 : vector<128x32xf32>
    %c0_6 = arith.constant 0 : index
    %c0_7 = arith.constant 0 : index
    %8 = vector.load %arg8[%c0_6, %c0_7] : memref<128x32xf32, #tpu.memory_space<vmem>>, vector<128x32xf32>
    tpu.vector_store %arg8[%c0_6, %c0_7], %7 {strides = array<i32>} : memref<128x32xf32, #tpu.memory_space<vmem>>, vector<128x32xf32>,
    %c0_i32_8 = arith.constant 0 : i32
    %9 = arith.cmpi eq, %arg1, %c0_i32_8 : i32
    %10 = arith.extui %9 : i1 to i32
    %c0_i32_9 = arith.constant 0 : i32
    %11 = arith.cmpi ne, %10, %c0_i32_9 : i32
    scf.if %11 {
      %cst_10 = arith.constant 0.000000e+00 : f32
      %12 = vector.broadcast %cst_10 : f32 to vector<128xf32>
      %c0_11 = arith.constant 0 : index
      %c0_12 = arith.constant 0 : index
      %13 = vector.load %arg8[%c0_11, %c0_12] : memref<128x32xf32, #tpu.memory_space<vmem>>, vector<128x32xf32>
      %c0_13 = arith.constant 0 : index
      %c0_14 = arith.constant 0 : index
      %14 = vector.load %arg4[%c0_13, %c0_14] : memref<1x32xf32, #tpu.memory_space<vmem>>, vector<1x32xf32>
      %15 = vector.broadcast %14 : vector<1x32xf32> to vector<128x32xf32>
      %16 = arith.addf %13, %15 : vector<128x32xf32>
      %cst_15 = arith.constant 0.000000e+00 : f32
      %17 = vector.broadcast %cst_15 : f32 to vector<128x32xf32>
      %18 = arith.maximumf %16, %17 : vector<128x32xf32>
      %c0_16 = arith.constant 0 : index
      %c0_17 = arith.constant 0 : index
      %19 = vector.load %arg5[%c0_16, %c0_17] : memref<1x32xf32, #tpu.memory_space<vmem>>, vector<1x32xf32>
      %20 = vector.broadcast %19 : vector<1x32xf32> to vector<128x32xf32>
      %21 = arith.mulf %18, %20 : vector<128x32xf32>
      %cst_18 = arith.constant dense<0.000000e+00> : vector<128xf32>
      %22 = vector.multi_reduction <add>, %21, %cst_18 [1] : vector<128x32xf32> to vector<128xf32>
      %23 = arith.addf %12, %22 : vector<128xf32>
      %c0_19 = arith.constant 0 : index
      %c0_20 = arith.constant 0 : index
      %24 = memref.load %arg6[%c0_19, %c0_20] : memref<1x1xf32, #tpu.memory_space<smem>>
      %25 = vector.broadcast %24 : f32 to vector<128xf32>
      %26 = arith.addf %23, %25 : vector<128xf32>
      %27 = vector.shape_cast %26 : vector<128xf32> to vector<1x128xf32>
      %c0_21 = arith.constant 0 : index
      %c0_22 = arith.constant 0 : index
      %28 = vector.load %arg7[%c0_21, %c0_22] : memref<1x128xf32, #tpu.memory_space<vmem>>, vector<1x128xf32>
      tpu.vector_store %arg7[%c0_21, %c0_22], %27 {strides = array<i32>} : memref<1x128xf32, #tpu.memory_space<vmem>>, vector<1x128xf32>,
    } else {
    }
    return
  }
  func.func @transform_0(%arg0: i32, %arg1: i32) -> (i32, i32) {
    %c0_i32 = arith.constant 0 : i32
    return %arg0, %arg1 : i32, i32
  }
  func.func @transform_1(%arg0: i32, %arg1: i32) -> (i32, i32) {
    %c0_i32 = arith.constant 0 : i32
    %c0_i32_0 = arith.constant 0 : i32
    return %arg1, %c0_i32 : i32, i32
  }
  func.func @transform_2(%arg0: i32, %arg1: i32) -> (i32, i32) {
    %c0_i32 = arith.constant 0 : i32
    %c0_i32_0 = arith.constant 0 : i32
    %c0_i32_1 = arith.constant 0 : i32
    return %c0_i32, %c0_i32_0 : i32, i32
  }
  func.func @transform_3(%arg0: i32, %arg1: i32) -> (i32, i32) {
    %c0_i32 = arith.constant 0 : i32
    %c0_i32_0 = arith.constant 0 : i32
    %c0_i32_1 = arith.constant 0 : i32
    return %c0_i32, %c0_i32_0 : i32, i32
  }
  func.func @transform_4(%arg0: i32, %arg1: i32) -> (i32, i32) {
    %c0_i32 = arith.constant 0 : i32
    %c0_i32_0 = arith.constant 0 : i32
    %c0_i32_1 = arith.constant 0 : i32
    return %c0_i32, %c0_i32_0 : i32, i32
  }
  func.func @transform_5(%arg0: i32, %arg1: i32) -> (i32, i32) {
    %c0_i32 = arith.constant 0 : i32
    %c0_i32_0 = arith.constant 0 : i32
    return %arg0, %c0_i32 : i32, i32
  }
}

</mosaic_0001>

<llo_original>
// kernel: tpu_custom_call.1
$region0: #{tpu_custom_call.1}
  #allocation0 [shape = 'u32[]', space=smem, size = 0x4, offset = 0x4, fixed_abs, tag = 'smem constant byte address 0x4 - core index']
  #allocation1 [shape = 'u32[144,128]{1,0:T(1,128)}', space=vmem, size = 0x12000, scoped, tag = 'internal scratch']
  #allocation2 [shape = 'f32[128,32]{1,0:T(8,128)}', space=vmem, size = 0x10000, scoped, tag = 'scratch operand']
  #allocation3 [shape = 'f32[1,1]{1,0:T(1,128)S(6)}', space=smem, size = 0x200, scoped, tag = 'scoped memory for tpu_custom_call.1']
  %s0 = inlined_call_operand.vmem [shape: f32[128,32], index: 0, kind: input, shape index: {}]
  %s1 = inlined_call_operand.vmem [shape: f32[32,32], index: 1, kind: input, shape index: {}]
  %s2 = inlined_call_operand.vmem [shape: f32[1,32], index: 2, kind: input, shape index: {}]
  %s3 = inlined_call_operand.vmem [shape: f32[1,32], index: 3, kind: input, shape index: {}]
  %s4 = inlined_call_operand.<no memory space> [shape: f32[1,1], index: 4, kind: input, shape index: {}]
  %s5 = inlined_call_operand.hbm [shape: f32[1,128], index: 5, kind: output, shape index: {}]
  %s6 = sld [smem:[#allocation0]]
  $region38: #{tpu_custom_call.1} parent=0
    _
  %s8 = ssub.s32 1, %s6
  %s9 = scalar_select 0, %s8, %s6
  %10 = sst [smem:[#allocation3]] %s4
  $region1: #{tpu_custom_call.1} parent=0
    #allocation4 [shape = 'u8[512]{0}', space=vmem, size = 0x400, scoped, tag = 'output window, operand 0, single buffered']
    #allocation5 [shape = 's32[1]{0}', space=sflag, size = 0x4, scoped, tag = 'scoped memory for tpu_custom_call.1']
    %11 = vsyncpa [#allocation5], 0
    // Predicated region
    $region2: #{tpu_custom_call.1} parent=1 // pred_check
      _
    $region3: #{tpu_custom_call.1} parent=1 // pred_check_branch
      %13 = sbr.rel (0) target = $region5
    $region4: #{tpu_custom_call.1} parent=1 // pred_region
      _
    $region5: #{tpu_custom_call.1} parent=1 // pred_fallthru
      _
    // Predicated region
    $region6: #{tpu_custom_call.1} parent=1 // pred_check
      _
    $region7: #{tpu_custom_call.1} parent=1 // pred_check_branch
      %15 = sbr.rel (0) target = $region9
    $region8: #{tpu_custom_call.1} parent=1 // pred_region
      _
    $region9: #{tpu_custom_call.1} parent=1 // pred_fallthru
      _
    // Predicated region
    $region10: #{tpu_custom_call.1} parent=1 // pred_check
      _
    $region11: #{tpu_custom_call.1} parent=1 // pred_check_branch
      %17 = sbr.rel (0) target = $region13
    $region12: #{tpu_custom_call.1} parent=1 // pred_region
      _
    $region13: #{tpu_custom_call.1} parent=1 // pred_fallthru
      _
    // Predicated region
    $region14: #{tpu_custom_call.1} parent=1 // pred_check
      _
    $region15: #{tpu_custom_call.1} parent=1 // pred_check_branch
      %19 = sbr.rel (0) target = $region17
    $region16: #{tpu_custom_call.1} parent=1 // pred_region
      _
    $region17: #{tpu_custom_call.1} parent=1 // pred_fallthru
      _
    // Predicated region
    $region18: #{tpu_custom_call.1} parent=1 // pred_check
      _
    $region19: #{tpu_custom_call.1} parent=1 // pred_check_branch
      %21 = sbr.rel (0) target = $region21
    $region20: #{tpu_custom_call.1} parent=1 // pred_region
      _
    $region21: #{tpu_custom_call.1} parent=1 // pred_fallthru
      _
    %p22 = scmp.eq.s32.totalorder 0, 0
    // Predicated region
    $region22: #{tpu_custom_call.1} parent=1 // pred_check
      %p23 = pneg %p22
    $region23: #{tpu_custom_call.1} parent=1 // pred_check_branch
      %25 = sbr.rel (%p23) target = $region25
    $region24: #{tpu_custom_call.1} parent=1 // pred_region
      %vm26 = vcmask 261120
      %27 = vst.msk [vmem:[#allocation2] sm:$0xff] %vm26, 0.0
      %28 = vst.msk [vmem:[#allocation2 + $0x8] sm:$0xff] %vm26, 0.0
      %29 = vst.msk [vmem:[#allocation2 + $0x10] sm:$0xff] %vm26, 0.0
      %30 = vst.msk [vmem:[#allocation2 + $0x18] sm:$0xff] %vm26, 0.0
      %31 = vst.msk [vmem:[#allocation2 + $0x20] sm:$0xff] %vm26, 0.0
      %32 = vst.msk [vmem:[#allocation2 + $0x28] sm:$0xff] %vm26, 0.0
      %33 = vst.msk [vmem:[#allocation2 + $0x30] sm:$0xff] %vm26, 0.0
      %34 = vst.msk [vmem:[#allocation2 + $0x38] sm:$0xff] %vm26, 0.0
      %35 = vst.msk [vmem:[#allocation2 + $0x40] sm:$0xff] %vm26, 0.0
      %36 = vst.msk [vmem:[#allocation2 + $0x48] sm:$0xff] %vm26, 0.0
      %37 = vst.msk [vmem:[#allocation2 + $0x50] sm:$0xff] %vm26, 0.0
      %38 = vst.msk [vmem:[#allocation2 + $0x58] sm:$0xff] %vm26, 0.0
      %39 = vst.msk [vmem:[#allocation2 + $0x60] sm:$0xff] %vm26, 0.0
      %40 = vst.msk [vmem:[#allocation2 + $0x68] sm:$0xff] %vm26, 0.0
      %41 = vst.msk [vmem:[#allocation2 + $0x70] sm:$0xff] %vm26, 0.0
      %42 = vst.msk [vmem:[#allocation2 + $0x78] sm:$0xff] %vm26, 0.0
    $region25: #{tpu_custom_call.1} parent=1 // pred_fallthru
      _
    %v43 = vld [vmem:[#allocation2] sm:$0xff]
    %v44 = vld [vmem:[#allocation2 + $0x8] sm:$0xff]
    %v45 = vld [vmem:[#allocation2 + $0x10] sm:$0xff]
    %v46 = vld [vmem:[#allocation2 + $0x18] sm:$0xff]
    %v47 = vld [vmem:[#allocation2 + $0x20] sm:$0xff]
    %v48 = vld [vmem:[#allocation2 + $0x28] sm:$0xff]
    %v49 = vld [vmem:[#allocation2 + $0x30] sm:$0xff]
    %v50 = vld [vmem:[#allocation2 + $0x38] sm:$0xff]
    %v51 = vld [vmem:[#allocation2 + $0x40] sm:$0xff]
    %v52 = vld [vmem:[#allocation2 + $0x48] sm:$0xff]
    %v53 = vld [vmem:[#allocation2 + $0x50] sm:$0xff]
    %v54 = vld [vmem:[#allocation2 + $0x58] sm:$0xff]
    %v55 = vld [vmem:[#allocation2 + $0x60] sm:$0xff]
    %v56 = vld [vmem:[#allocation2 + $0x68] sm:$0xff]
    %v57 = vld [vmem:[#allocation2 + $0x70] sm:$0xff]
    %v58 = vld [vmem:[#allocation2 + $0x78] sm:$0xff]
    %v59 = vld [vmem:[%s0] sm:$0xff]
    %v60 = vld [vmem:[%s0 + $0x8] sm:$0xff]
    %v61 = vld [vmem:[%s0 + $0x10] sm:$0xff]
    %v62 = vld [vmem:[%s0 + $0x18] sm:$0xff]
    %v63 = vld [vmem:[%s0 + $0x20] sm:$0xff]
    %v64 = vld [vmem:[%s0 + $0x28] sm:$0xff]
    %v65 = vld [vmem:[%s0 + $0x30] sm:$0xff]
    %v66 = vld [vmem:[%s0 + $0x38] sm:$0xff]
    %v67 = vld [vmem:[%s0 + $0x40] sm:$0xff]
    %v68 = vld [vmem:[%s0 + $0x48] sm:$0xff]
    %v69 = vld [vmem:[%s0 + $0x50] sm:$0xff]
    %v70 = vld [vmem:[%s0 + $0x58] sm:$0xff]
    %v71 = vld [vmem:[%s0 + $0x60] sm:$0xff]
    %v72 = vld [vmem:[%s0 + $0x68] sm:$0xff]
    %v73 = vld [vmem:[%s0 + $0x70] sm:$0xff]
    %v74 = vld [vmem:[%s0 + $0x78] sm:$0xff]
    %v75 = vld [vmem:[%s1] sm:$0xff]
    %v76 = vld [vmem:[%s1 + $0x8] sm:$0xff]
    %v77 = vld [vmem:[%s1 + $0x10] sm:$0xff]
    %v78 = vld [vmem:[%s1 + $0x18] sm:$0xff]
    %vm79 = vcmask 261120
    %v81 = vsel %vm79, %v59, 0
    %v84 = vsel %vm79, %v60, 0
    %v87 = vsel %vm79, %v61, 0
    %v90 = vsel %vm79, %v62, 0
    %v93 = vsel %vm79, %v63, 0
    %v96 = vsel %vm79, %v64, 0
    %v99 = vsel %vm79, %v65, 0
    %v102 = vsel %vm79, %v66, 0
    %v105 = vsel %vm79, %v67, 0
    %v108 = vsel %vm79, %v68, 0
    %v111 = vsel %vm79, %v69, 0
    %v114 = vsel %vm79, %v70, 0
    %v117 = vsel %vm79, %v71, 0
    %v120 = vsel %vm79, %v72, 0
    %v123 = vsel %vm79, %v73, 0
    %v126 = vsel %vm79, %v74, 0
    %128 = vmatprep.subr.mxu0 0.0
    %129 = vmatpush1.msra.mxu0 %v75
    %130 = vmatprep.subr.mxu0 0.0
    %131 = vmatpush1.msra.mxu0 %v76
    %132 = vmatprep.subr.mxu0 0.0
    %133 = vmatpush1.msra.mxu0 %v77
    %134 = vmatprep.subr.mxu0 0.0
    %135 = vmatpush1.msra.mxu0 %v78
    %136 = vmatprep.subr.mxu0 0.0
    %137 = vmatpush1.msra.mxu0 0.0
    %138 = vmatprep.subr.mxu0 0.0
    %139 = vmatpush1.msra.mxu0 0.0
    %140 = vmatprep.subr.mxu0 0.0
    %141 = vmatpush1.msra.mxu0 0.0
    %142 = vmatprep.subr.mxu0 0.0
    %143 = vmatpush1.msra.mxu0 0.0
    %144 = vmatprep.subr.mxu0 0.0
    %145 = vmatpush1.msra.mxu0 0.0
    %146 = vmatprep.subr.mxu0 0.0
    %147 = vmatpush1.msra.mxu0 0.0
    %148 = vmatprep.subr.mxu0 0.0
    %149 = vmatpush1.msra.mxu0 0.0
    %150 = vmatprep.subr.mxu0 0.0
    %151 = vmatpush1.msra.mxu0 0.0
    %152 = vmatprep.subr.mxu0 0.0
    %153 = vmatpush1.msra.mxu0 0.0
    %154 = vmatprep.subr.mxu0 0.0
    %155 = vmatpush1.msra.mxu0 0.0
    %156 = vmatprep.subr.mxu0 0.0
    %157 = vmatpush1.msra.mxu0 0.0
    %158 = vmatprep.subr.mxu0 0.0
    %159 = vmatpush1.msra.mxu0 0.0
    %160 = vmatprep.subr.mxu0 0.0
    %161 = vmatpush1.msra.mxu0 0.0
    %162 = vmatprep.subr.mxu0 0.0
    %163 = vmatpush1.msra.mxu0 0.0
    %164 = vmatprep.subr.mxu0 0.0
    %165 = vmatpush1.msra.mxu0 0.0
    %166 = vmatprep.subr.mxu0 0.0
    %167 = vmatpush1.msra.mxu0 0.0
    %168 = vmatprep.subr.mxu0 0.0
    %169 = vmatpush1.msra.mxu0 0.0
    %170 = vmatprep.subr.mxu0 0.0
    %171 = vmatpush1.msra.mxu0 0.0
    %172 = vmatprep.subr.mxu0 0.0
    %173 = vmatpush1.msra.mxu0 0.0
    %174 = vmatprep.subr.mxu0 0.0
    %175 = vmatpush1.msra.mxu0 0.0
    %176 = vmatprep.subr.mxu0 0.0
    %177 = vmatpush1.msra.mxu0 0.0
    %178 = vmatprep.subr.mxu0 0.0
    %179 = vmatpush1.msra.mxu0 0.0
    %180 = vmatprep.subr.mxu0 0.0
    %181 = vmatpush1.msra.mxu0 0.0
    %182 = vmatprep.subr.mxu0 0.0
    %183 = vmatpush1.msra.mxu0 0.0
    %184 = vmatprep.subr.mxu0 0.0
    %185 = vmatpush1.msra.mxu0 0.0
    %186 = vmatprep.subr.mxu0 0.0
    %187 = vmatpush1.msra.mxu0 0.0
    %188 = vmatprep.subr.mxu0 0.0
    %189 = vmatpush1.msra.mxu0 0.0
    %190 = vmatprep.subr.mxu0 0.0
    %191 = vmatpush1.msra.mxu0 0.0
    %192 = vmatprep.mubr.f32.mxu0 0.0
    %193 = vmatmul.mubr.f32.gmra.mrb[0].mxu0 %v81
    %v194 = vpop.f32.mrb[0].mxu0
    %v195 = vadd.f32 0.0, %v194
    %v196 = vpop.f32.mrb[0].mxu0
    %197 = vmatprep.mubr.f32.mxu0 0.0
    %198 = vmatmul.mubr.f32.gmra.mrb[0].mxu0 %v84
    %v199 = vpop.f32.mrb[0].mxu0
    %v200 = vadd.f32 0.0, %v199
    %v201 = vpop.f32.mrb[0].mxu0
    %202 = vmatprep.mubr.f32.mxu0 0.0
    %203 = vmatmul.mubr.f32.gmra.mrb[0].mxu0 %v87
    %v204 = vpop.f32.mrb[0].mxu0
    %v205 = vadd.f32 0.0, %v204
    %v206 = vpop.f32.mrb[0].mxu0
    %207 = vmatprep.mubr.f32.mxu0 0.0
    %208 = vmatmul.mubr.f32.gmra.mrb[0].mxu0 %v90
    %v209 = vpop.f32.mrb[0].mxu0
    %v210 = vadd.f32 0.0, %v209
    %v211 = vpop.f32.mrb[0].mxu0
    %212 = vmatprep.mubr.f32.mxu0 0.0
    %213 = vmatmul.mubr.f32.gmra.mrb[0].mxu0 %v93
    %v214 = vpop.f32.mrb[0].mxu0
    %v215 = vadd.f32 0.0, %v214
    %v216 = vpop.f32.mrb[0].mxu0
    %217 = vmatprep.mubr.f32.mxu0 0.0
    %218 = vmatmul.mubr.f32.gmra.mrb[0].mxu0 %v96
    %v219 = vpop.f32.mrb[0].mxu0
    %v220 = vadd.f32 0.0, %v219
    %v221 = vpop.f32.mrb[0].mxu0
    %222 = vmatprep.mubr.f32.mxu0 0.0
    %223 = vmatmul.mubr.f32.gmra.mrb[0].mxu0 %v99
    %v224 = vpop.f32.mrb[0].mxu0
    %v225 = vadd.f32 0.0, %v224
    %v226 = vpop.f32.mrb[0].mxu0
    %227 = vmatprep.mubr.f32.mxu0 0.0
    %228 = vmatmul.mubr.f32.gmra.mrb[0].mxu0 %v102
    %v229 = vpop.f32.mrb[0].mxu0
    %v230 = vadd.f32 0.0, %v229
    %v231 = vpop.f32.mrb[0].mxu0
    %232 = vmatprep.mubr.f32.mxu0 0.0
    %233 = vmatmul.mubr.f32.gmra.mrb[0].mxu0 %v105
    %v234 = vpop.f32.mrb[0].mxu0
    %v235 = vadd.f32 0.0, %v234
    %v236 = vpop.f32.mrb[0].mxu0
    %237 = vmatprep.mubr.f32.mxu0 0.0
    %238 = vmatmul.mubr.f32.gmra.mrb[0].mxu0 %v108
    %v239 = vpop.f32.mrb[0].mxu0
    %v240 = vadd.f32 0.0, %v239
    %v241 = vpop.f32.mrb[0].mxu0
    %242 = vmatprep.mubr.f32.mxu0 0.0
    %243 = vmatmul.mubr.f32.gmra.mrb[0].mxu0 %v111
    %v244 = vpop.f32.mrb[0].mxu0
    %v245 = vadd.f32 0.0, %v244
    %v246 = vpop.f32.mrb[0].mxu0
    %247 = vmatprep.mubr.f32.mxu0 0.0
    %248 = vmatmul.mubr.f32.gmra.mrb[0].mxu0 %v114
    %v249 = vpop.f32.mrb[0].mxu0
    %v250 = vadd.f32 0.0, %v249
    %v251 = vpop.f32.mrb[0].mxu0
    %252 = vmatprep.mubr.f32.mxu0 0.0
    %253 = vmatmul.mubr.f32.gmra.mrb[0].mxu0 %v117
    %v254 = vpop.f32.mrb[0].mxu0
    %v255 = vadd.f32 0.0, %v254
    %v256 = vpop.f32.mrb[0].mxu0
    %257 = vmatprep.mubr.f32.mxu0 0.0
    %258 = vmatmul.mubr.f32.gmra.mrb[0].mxu0 %v120
    %v259 = vpop.f32.mrb[0].mxu0
    %v260 = vadd.f32 0.0, %v259
    %v261 = vpop.f32.mrb[0].mxu0
    %262 = vmatprep.mubr.f32.mxu0 0.0
    %263 = vmatmul.mubr.f32.gmra.mrb[0].mxu0 %v123
    %v264 = vpop.f32.mrb[0].mxu0
    %v265 = vadd.f32 0.0, %v264
    %v266 = vpop.f32.mrb[0].mxu0
    %267 = vmatprep.mubr.f32.mxu0 0.0
    %268 = vmatmul.mubr.f32.gmra.mrb[0].mxu0 %v126
    %v269 = vpop.f32.mrb[0].mxu0
    %v270 = vadd.f32 0.0, %v269
    %v271 = vpop.f32.mrb[0].mxu0
    %272 = vdwg.mxu0
    %v273 = vadd.f32 %v43, %v195
    %v274 = vadd.f32 %v44, %v200
    %v275 = vadd.f32 %v45, %v205
    %v276 = vadd.f32 %v46, %v210
    %v277 = vadd.f32 %v47, %v215
    %v278 = vadd.f32 %v48, %v220
    %v279 = vadd.f32 %v49, %v225
    %v280 = vadd.f32 %v50, %v230
    %v281 = vadd.f32 %v51, %v235
    %v282 = vadd.f32 %v52, %v240
    %v283 = vadd.f32 %v53, %v245
    %v284 = vadd.f32 %v54, %v250
    %v285 = vadd.f32 %v55, %v255
    %v286 = vadd.f32 %v56, %v260
    %v287 = vadd.f32 %v57, %v265
    %v288 = vadd.f32 %v58, %v270
    %289 = vst.msk [vmem:[#allocation2] sm:$0xff] %vm79, %v273
    %290 = vst.msk [vmem:[#allocation2 + $0x8] sm:$0xff] %vm79, %v274
    %291 = vst.msk [vmem:[#allocation2 + $0x10] sm:$0xff] %vm79, %v275
    %292 = vst.msk [vmem:[#allocation2 + $0x18] sm:$0xff] %vm79, %v276
    %293 = vst.msk [vmem:[#allocation2 + $0x20] sm:$0xff] %vm79, %v277
    %294 = vst.msk [vmem:[#allocation2 + $0x28] sm:$0xff] %vm79, %v278
    %295 = vst.msk [vmem:[#allocation2 + $0x30] sm:$0xff] %vm79, %v279
    %296 = vst.msk [vmem:[#allocation2 + $0x38] sm:$0xff] %vm79, %v280
    %297 = vst.msk [vmem:[#allocation2 + $0x40] sm:$0xff] %vm79, %v281
    %298 = vst.msk [vmem:[#allocation2 + $0x48] sm:$0xff] %vm79, %v282
    %299 = vst.msk [vmem:[#allocation2 + $0x50] sm:$0xff] %vm79, %v283
    %300 = vst.msk [vmem:[#allocation2 + $0x58] sm:$0xff] %vm79, %v284
    %301 = vst.msk [vmem:[#allocation2 + $0x60] sm:$0xff] %vm79, %v285
    %302 = vst.msk [vmem:[#allocation2 + $0x68] sm:$0xff] %vm79, %v286
    %303 = vst.msk [vmem:[#allocation2 + $0x70] sm:$0xff] %vm79, %v287
    %304 = vst.msk [vmem:[#allocation2 + $0x78] sm:$0xff] %vm79, %v288
    // Predicated region
    $region26: #{tpu_custom_call.1} parent=1 // pred_check
      %p305 = pneg %p22
    $region27: #{tpu_custom_call.1} parent=1 // pred_check_branch
      %307 = sbr.rel (%p305) target = $region29
    $region28: #{tpu_custom_call.1} parent=1 // pred_region
      %v308 = vld [vmem:[#allocation2] sm:$0xff]
      %v309 = vld [vmem:[#allocation2 + $0x8] sm:$0xff]
      %v310 = vld [vmem:[#allocation2 + $0x10] sm:$0xff]
      %v311 = vld [vmem:[#allocation2 + $0x18] sm:$0xff]
      %v312 = vld [vmem:[#allocation2 + $0x20] sm:$0xff]
      %v313 = vld [vmem:[#allocation2 + $0x28] sm:$0xff]
      %v314 = vld [vmem:[#allocation2 + $0x30] sm:$0xff]
      %v315 = vld [vmem:[#allocation2 + $0x38] sm:$0xff]
      %v316 = vld [vmem:[#allocation2 + $0x40] sm:$0xff]
      %v317 = vld [vmem:[#allocation2 + $0x48] sm:$0xff]
      %v318 = vld [vmem:[#allocation2 + $0x50] sm:$0xff]
      %v319 = vld [vmem:[#allocation2 + $0x58] sm:$0xff]
      %v320 = vld [vmem:[#allocation2 + $0x60] sm:$0xff]
      %v321 = vld [vmem:[#allocation2 + $0x68] sm:$0xff]
      %v322 = vld [vmem:[#allocation2 + $0x70] sm:$0xff]
      %v323 = vld [vmem:[#allocation2 + $0x78] sm:$0xff]
      %v324 = vld [vmem:[%s2] sm:$0x1]
      %v326 = vlaneseq
      %v327 = vshrl.u32 %v326, 7
      %v328 = vsub.s32 0, %v327
      %v329 = vrot.slane %v324, %v328
      %v331 = vadd.f32 %v308, %v329
      %v332 = vadd.f32 %v309, %v329
      %v333 = vadd.f32 %v310, %v329
      %v334 = vadd.f32 %v311, %v329
      %v335 = vadd.f32 %v312, %v329
      %v336 = vadd.f32 %v313, %v329
      %v337 = vadd.f32 %v314, %v329
      %v338 = vadd.f32 %v315, %v329
      %v339 = vadd.f32 %v316, %v329
      %v340 = vadd.f32 %v317, %v329
      %v341 = vadd.f32 %v318, %v329
      %v342 = vadd.f32 %v319, %v329
      %v343 = vadd.f32 %v320, %v329
      %v344 = vadd.f32 %v321, %v329
      %v345 = vadd.f32 %v322, %v329
      %v346 = vadd.f32 %v323, %v329
      %v347 = vmax.f32 %v331, 0.0
      %v348 = vmax.f32 %v332, 0.0
      %v349 = vmax.f32 %v333, 0.0
      %v350 = vmax.f32 %v334, 0.0
      %v351 = vmax.f32 %v335, 0.0
      %v352 = vmax.f32 %v336, 0.0
      %v353 = vmax.f32 %v337, 0.0
      %v354 = vmax.f32 %v338, 0.0
      %v355 = vmax.f32 %v339, 0.0
      %v356 = vmax.f32 %v340, 0.0
      %v357 = vmax.f32 %v341, 0.0
      %v358 = vmax.f32 %v342, 0.0
      %v359 = vmax.f32 %v343, 0.0
      %v360 = vmax.f32 %v344, 0.0
      %v361 = vmax.f32 %v345, 0.0
      %v362 = vmax.f32 %v346, 0.0
      %v363 = vld [vmem:[%s3] sm:$0x1]
      %v365 = vlaneseq
      %v366 = vshrl.u32 %v365, 7
      %v367 = vsub.s32 0, %v366
      %v368 = vrot.slane %v363, %v367
      %v370 = vmul.f32 %v347, %v368
      %v371 = vmul.f32 %v348, %v368
      %v372 = vmul.f32 %v349, %v368
      %v373 = vmul.f32 %v350, %v368
      %v374 = vmul.f32 %v351, %v368
      %v375 = vmul.f32 %v352, %v368
      %v376 = vmul.f32 %v353, %v368
      %v377 = vmul.f32 %v354, %v368
      %v378 = vmul.f32 %v355, %v368
      %v379 = vmul.f32 %v356, %v368
      %v380 = vmul.f32 %v357, %v368
      %v381 = vmul.f32 %v358, %v368
      %v382 = vmul.f32 %v359, %v368
      %v383 = vmul.f32 %v360, %v368
      %v384 = vmul.f32 %v361, %v368
      %v385 = vmul.f32 %v362, %v368
      %v386 = vsel %vm79, %v370, 0.0
      %387 = vadd.xlane.f32.xlu0 %v386
      %v388 = vpop.xlane.xlu0 %387
      %v389 = vsel %vm79, %v371, 0.0
      %390 = vadd.xlane.f32.xlu0 %v389
      %v391 = vpop.xlane.xlu0 %390
      %v392 = vsel %vm79, %v372, 0.0
      %393 = vadd.xlane.f32.xlu0 %v392
      %v394 = vpop.xlane.xlu0 %393
      %v395 = vsel %vm79, %v373, 0.0
      %396 = vadd.xlane.f32.xlu0 %v395
      %v397 = vpop.xlane.xlu0 %396
      %v398 = vsel %vm79, %v374, 0.0
      %399 = vadd.xlane.f32.xlu0 %v398
      %v400 = vpop.xlane.xlu0 %399
      %v401 = vsel %vm79, %v375, 0.0
      %402 = vadd.xlane.f32.xlu0 %v401
      %v403 = vpop.xlane.xlu0 %402
      %v404 = vsel %vm79, %v376, 0.0
      %405 = vadd.xlane.f32.xlu0 %v404
      %v406 = vpop.xlane.xlu0 %405
      %v407 = vsel %vm79, %v377, 0.0
      %408 = vadd.xlane.f32.xlu0 %v407
      %v409 = vpop.xlane.xlu0 %408
      %v410 = vsel %vm79, %v378, 0.0
      %411 = vadd.xlane.f32.xlu0 %v410
      %v412 = vpop.xlane.xlu0 %411
      %v413 = vsel %vm79, %v379, 0.0
      %414 = vadd.xlane.f32.xlu0 %v413
      %v415 = vpop.xlane.xlu0 %414
      %v416 = vsel %vm79, %v380, 0.0
      %417 = vadd.xlane.f32.xlu0 %v416
      %v418 = vpop.xlane.xlu0 %417
      %v419 = vsel %vm79, %v381, 0.0
      %420 = vadd.xlane.f32.xlu0 %v419
      %v421 = vpop.xlane.xlu0 %420
      %v422 = vsel %vm79, %v382, 0.0
      %423 = vadd.xlane.f32.xlu0 %v422
      %v424 = vpop.xlane.xlu0 %423
      %v425 = vsel %vm79, %v383, 0.0
      %426 = vadd.xlane.f32.xlu0 %v425
      %v427 = vpop.xlane.xlu0 %426
      %v428 = vsel %vm79, %v384, 0.0
      %429 = vadd.xlane.f32.xlu0 %v428
      %v430 = vpop.xlane.xlu0 %429
      %v431 = vsel %vm79, %v385, 0.0
      %432 = vadd.xlane.f32.xlu0 %v431
      %v433 = vpop.xlane.xlu0 %432
      %v434 = vadd.f32 %v388, 0.0
      %v435 = vadd.f32 %v391, 0.0
      %v436 = vadd.f32 %v394, 0.0
      %v437 = vadd.f32 %v397, 0.0
      %v438 = vadd.f32 %v400, 0.0
      %v439 = vadd.f32 %v403, 0.0
      %v440 = vadd.f32 %v406, 0.0
      %v441 = vadd.f32 %v409, 0.0
      %v442 = vadd.f32 %v412, 0.0
      %v443 = vadd.f32 %v415, 0.0
      %v444 = vadd.f32 %v418, 0.0
      %v445 = vadd.f32 %v421, 0.0
      %v446 = vadd.f32 %v424, 0.0
      %v447 = vadd.f32 %v427, 0.0
      %v448 = vadd.f32 %v430, 0.0
      %v449 = vadd.f32 %v433, 0.0
      %s450 = sld [smem:[#allocation3]]
      %v451 = vstv %s450
      %v452 = vadd.f32 %v434, %v451
      %v453 = vadd.f32 %v435, %v451
      %v454 = vadd.f32 %v436, %v451
      %v455 = vadd.f32 %v437, %v451
      %v456 = vadd.f32 %v438, %v451
      %v457 = vadd.f32 %v439, %v451
      %v458 = vadd.f32 %v440, %v451
      %v459 = vadd.f32 %v441, %v451
      %v460 = vadd.f32 %v442, %v451
      %v461 = vadd.f32 %v443, %v451
      %v462 = vadd.f32 %v444, %v451
      %v463 = vadd.f32 %v445, %v451
      %v464 = vadd.f32 %v446, %v451
      %v465 = vadd.f32 %v447, %v451
      %v466 = vadd.f32 %v448, %v451
      %v467 = vadd.f32 %v449, %v451
      %v484 = vlaneseq
      %v485 = vand.u32 %v484, 127
      %v486 = vlaneseq
      %v487 = vshrl.u32 %v486, 7
      %v488 = vsub.s32 %v485, %v487
      %v489 = vrot.slane %v452, %v488
      %v490 = vadd.s32 %v485, 4294967288
      %v491 = vlaneseq
      %v492 = vshrl.u32 %v491, 7
      %v493 = vsub.s32 %v490, %v492
      %v494 = vrot.slane %v453, %v493
      %vm495 = vcmask 130112
      %v496 = vsel %vm495, %v494, %v489
      %v497 = vadd.s32 %v485, 4294967280
      %v498 = vlaneseq
      %v499 = vshrl.u32 %v498, 7
      %v500 = vsub.s32 %v497, %v499
      %v501 = vrot.slane %v454, %v500
      %vm502 = vcmask 195712
      %v503 = vsel %vm502, %v501, %v496
      %v504 = vadd.s32 %v485, 4294967272
      %v505 = vlaneseq
      %v506 = vshrl.u32 %v505, 7
      %v507 = vsub.s32 %v504, %v506
      %v508 = vrot.slane %v455, %v507
      %vm509 = vcmask 261312
      %v510 = vsel %vm509, %v508, %v503
      %v511 = vadd.s32 %v485, 4294967264
      %v512 = vlaneseq
      %v513 = vshrl.u32 %v512, 7
      %v514 = vsub.s32 %v511, %v513
      %v515 = vrot.slane %v456, %v514
      %vm516 = vcmask 326912
      %v517 = vsel %vm516, %v515, %v510
      %v518 = vadd.s32 %v485, 4294967256
      %v519 = vlaneseq
      %v520 = vshrl.u32 %v519, 7
      %v521 = vsub.s32 %v518, %v520
      %v522 = vrot.slane %v457, %v521
      %vm523 = vcmask 392512
      %v524 = vsel %vm523, %v522, %v517
      %v525 = vadd.s32 %v485, 4294967248
      %v526 = vlaneseq
      %v527 = vshrl.u32 %v526, 7
      %v528 = vsub.s32 %v525, %v527
      %v529 = vrot.slane %v458, %v528
      %vm530 = vcmask 458112
      %v531 = vsel %vm530, %v529, %v524
      %v532 = vadd.s32 %v485, 4294967240
      %v533 = vlaneseq
      %v534 = vshrl.u32 %v533, 7
      %v535 = vsub.s32 %v532, %v534
      %v536 = vrot.slane %v459, %v535
      %vm537 = vcmask 523712
      %v538 = vsel %vm537, %v536, %v531
      %v539 = vadd.s32 %v485, 4294967232
      %v540 = vlaneseq
      %v541 = vshrl.u32 %v540, 7
      %v542 = vsub.s32 %v539, %v541
      %v543 = vrot.slane %v460, %v542
      %vm544 = vcmask 589312
      %v545 = vsel %vm544, %v543, %v538
      %v546 = vadd.s32 %v485, 4294967224
      %v547 = vlaneseq
      %v548 = vshrl.u32 %v547, 7
      %v549 = vsub.s32 %v546, %v548
      %v550 = vrot.slane %v461, %v549
      %vm551 = vcmask 654912
      %v552 = vsel %vm551, %v550, %v545
      %v553 = vadd.s32 %v485, 4294967216
      %v554 = vlaneseq
      %v555 = vshrl.u32 %v554, 7
      %v556 = vsub.s32 %v553, %v555
      %v557 = vrot.slane %v462, %v556
      %vm558 = vcmask 720512
      %v559 = vsel %vm558, %v557, %v552
      %v560 = vadd.s32 %v485, 4294967208
      %v561 = vlaneseq
      %v562 = vshrl.u32 %v561, 7
      %v563 = vsub.s32 %v560, %v562
      %v564 = vrot.slane %v463, %v563
      %vm565 = vcmask 786112
      %v566 = vsel %vm565, %v564, %v559
      %v567 = vadd.s32 %v485, 4294967200
      %v568 = vlaneseq
      %v569 = vshrl.u32 %v568, 7
      %v570 = vsub.s32 %v567, %v569
      %v571 = vrot.slane %v464, %v570
      %vm572 = vcmask 851712
      %v573 = vsel %vm572, %v571, %v566
      %v574 = vadd.s32 %v485, 4294967192
      %v575 = vlaneseq
      %v576 = vshrl.u32 %v575, 7
      %v577 = vsub.s32 %v574, %v576
      %v578 = vrot.slane %v465, %v577
      %vm579 = vcmask 917312
      %v580 = vsel %vm579, %v578, %v573
      %v581 = vadd.s32 %v485, 4294967184
      %v582 = vlaneseq
      %v583 = vshrl.u32 %v582, 7
      %v584 = vsub.s32 %v581, %v583
      %v585 = vrot.slane %v466, %v584
      %vm586 = vcmask 982912
      %v587 = vsel %vm586, %v585, %v580
      %v588 = vadd.s32 %v485, 4294967176
      %v589 = vlaneseq
      %v590 = vshrl.u32 %v589, 7
      %v591 = vsub.s32 %v588, %v590
      %v592 = vrot.slane %v467, %v591
      %vm593 = vcmask 1048512
      %v594 = vsel %vm593, %v592, %v587
      %596 = vst [vmem:[#allocation4] sm:$0x1] %v594
    $region29: #{tpu_custom_call.1} parent=1 // pred_fallthru
      _
    // Predicated region
    $region30: #{tpu_custom_call.1} parent=1 // pred_check
      _
    $region31: #{tpu_custom_call.1} parent=1 // pred_check_branch
      %598 = sbr.rel (0) target = $region33
    $region32: #{tpu_custom_call.1} parent=1 // pred_region
      %s600 = ssub.s32 16, 16
      %601 = vsyncadd [#allocation5], %s600
      %s603 = sshll.u32 [#allocation4], 4
      %s604 = int_to_ptr.vmem [resolvable:$true] %s603
      %606 = dma.vmem_to_hbm [thread:$0]  %s604, 16, %s5, [#allocation5]
    $region33: #{tpu_custom_call.1} parent=1 // pred_fallthru
      _
    // Predicated region
    $region34: #{tpu_custom_call.1} parent=1 // pred_check
      _
    $region35: #{tpu_custom_call.1} parent=1 // pred_check_branch
      %608 = sbr.rel (0) target = $region37
    $region36: #{tpu_custom_call.1} parent=1 // pred_region
      %609 = dma.done [#allocation5], 16
    $region37: #{tpu_custom_call.1} parent=1 // pred_fallthru
      _
    %610 = vsyncpa [#allocation5], 1

// kernel: tpu_custom_call.1
$region0: #{tpu_custom_call.1}
  #allocation0 [shape = 'u32[]', space=smem, size = 0x4, offset = 0x4, fixed_abs, tag = 'smem constant byte address 0x4 - core index']
  #allocation1 [shape = 'u32[144,128]{1,0:T(1,128)}', space=vmem, size = 0x12000, scoped, tag = 'internal scratch']
  #allocation2 [shape = 'f32[128,32]{1,0:T(8,128)}', space=vmem, size = 0x10000, scoped, tag = 'scratch operand']
  #allocation3 [shape = 'f32[1,1]{1,0:T(1,128)S(6)}', space=smem, size = 0x200, scoped, tag = 'scoped memory for tpu_custom_call.1']
  %s0 = inlined_call_operand.vmem [shape: f32[128,32], index: 0, kind: input, shape index: {}]
  %s1 = inlined_call_operand.vmem [shape: f32[32,32], index: 1, kind: input, shape index: {}]
  %s2 = inlined_call_operand.vmem [shape: f32[1,32], index: 2, kind: input, shape index: {}]
  %s3 = inlined_call_operand.vmem [shape: f32[1,32], index: 3, kind: input, shape index: {}]
  %s4 = inlined_call_operand.<no memory space> [shape: f32[1,1], index: 4, kind: input, shape index: {}]
  %s5 = inlined_call_operand.hbm [shape: f32[1,128], index: 5, kind: output, shape index: {}]
  %s6 = sld [smem:[#allocation0]]
  $region38: #{tpu_custom_call.1} parent=0
    _
  %s8 = ssub.s32 1, %s6
  %s9 = scalar_select 0, %s8, %s6
  %10 = sst [smem:[#allocation3]] %s4
  $region1: #{tpu_custom_call.1} parent=0
    #allocation4 [shape = 'u8[512]{0}', space=vmem, size = 0x400, scoped, tag = 'output window, operand 0, single buffered']
    #allocation5 [shape = 's32[1]{0}', space=sflag, size = 0x4, scoped, tag = 'scoped memory for tpu_custom_call.1']
    %11 = vsyncpa [#allocation5], 0
    // Predicated region
    $region2: #{tpu_custom_call.1} parent=1 // pred_check
      _
    $region3: #{tpu_custom_call.1} parent=1 // pred_check_branch
      %13 = sbr.rel (0) target = $region5
    $region4: #{tpu_custom_call.1} parent=1 // pred_region
      _
    $region5: #{tpu_custom_call.1} parent=1 // pred_fallthru
      _
    // Predicated region
    $region6: #{tpu_custom_call.1} parent=1 // pred_check
      _
    $region7: #{tpu_custom_call.1} parent=1 // pred_check_branch
      %15 = sbr.rel (0) target = $region9
    $region8: #{tpu_custom_call.1} parent=1 // pred_region
      _
    $region9: #{tpu_custom_call.1} parent=1 // pred_fallthru
      _
    // Predicated region
    $region10: #{tpu_custom_call.1} parent=1 // pred_check
      _
    $region11: #{tpu_custom_call.1} parent=1 // pred_check_branch
      %17 = sbr.rel (0) target = $region13
    $region12: #{tpu_custom_call.1} parent=1 // pred_region
      _
    $region13: #{tpu_custom_call.1} parent=1 // pred_fallthru
      _
    // Predicated region
    $region14: #{tpu_custom_call.1} parent=1 // pred_check
      _
    $region15: #{tpu_custom_call.1} parent=1 // pred_check_branch
      %19 = sbr.rel (0) target = $region17
    $region16: #{tpu_custom_call.1} parent=1 // pred_region
      _
    $region17: #{tpu_custom_call.1} parent=1 // pred_fallthru
      _
    // Predicated region
    $region18: #{tpu_custom_call.1} parent=1 // pred_check
      _
    $region19: #{tpu_custom_call.1} parent=1 // pred_check_branch
      %21 = sbr.rel (0) target = $region21
    $region20: #{tpu_custom_call.1} parent=1 // pred_region
      _
    $region21: #{tpu_custom_call.1} parent=1 // pred_fallthru
      _
    %p22 = scmp.eq.s32.totalorder 0, 0
    // Predicated region
    $region22: #{tpu_custom_call.1} parent=1 // pred_check
      %p23 = pneg %p22
    $region23: #{tpu_custom_call.1} parent=1 // pred_check_branch
      %25 = sbr.rel (%p23) target = $region25
    $region24: #{tpu_custom_call.1} parent=1 // pred_region
      %vm26 = vcmask 261120
      %27 = vst.msk [vmem:[#allocation2] sm:$0xff] %vm26, 0.0
      %28 = vst.msk [vmem:[#allocation2 + $0x8] sm:$0xff] %vm26, 0.0
      %29 = vst.msk [vmem:[#allocation2 + $0x10] sm:$0xff] %vm26, 0.0
      %30 = vst.msk [vmem:[#allocation2 + $0x18] sm:$0xff] %vm26, 0.0
      %31 = vst.msk [vmem:[#allocation2 + $0x20] sm:$0xff] %vm26, 0.0
      %32 = vst.msk [vmem:[#allocation2 + $0x28] sm:$0xff] %vm26, 0.0
      %33 = vst.msk [vmem:[#allocation2 + $0x30] sm:$0xff] %vm26, 0.0
      %34 = vst.msk [vmem:[#allocation2 + $0x38] sm:$0xff] %vm26, 0.0
      %35 = vst.msk [vmem:[#allocation2 + $0x40] sm:$0xff] %vm26, 0.0
      %36 = vst.msk [vmem:[#allocation2 + $0x48] sm:$0xff] %vm26, 0.0
      %37 = vst.msk [vmem:[#allocation2 + $0x50] sm:$0xff] %vm26, 0.0
      %38 = vst.msk [vmem:[#allocation2 + $0x58] sm:$0xff] %vm26, 0.0
      %39 = vst.msk [vmem:[#allocation2 + $0x60] sm:$0xff] %vm26, 0.0
      %40 = vst.msk [vmem:[#allocation2 + $0x68] sm:$0xff] %vm26, 0.0
      %41 = vst.msk [vmem:[#allocation2 + $0x70] sm:$0xff] %vm26, 0.0
      %42 = vst.msk [vmem:[#allocation2 + $0x78] sm:$0xff] %vm26, 0.0
    $region25: #{tpu_custom_call.1} parent=1 // pred_fallthru
      _
    %v43 = vld [vmem:[#allocation2] sm:$0xff]
    %v44 = vld [vmem:[#allocation2 + $0x8] sm:$0xff]
    %v45 = vld [vmem:[#allocation2 + $0x10] sm:$0xff]
    %v46 = vld [vmem:[#allocation2 + $0x18] sm:$0xff]
    %v47 = vld [vmem:[#allocation2 + $0x20] sm:$0xff]
    %v48 = vld [vmem:[#allocation2 + $0x28] sm:$0xff]
    %v49 = vld [vmem:[#allocation2 + $0x30] sm:$0xff]
    %v50 = vld [vmem:[#allocation2 + $0x38] sm:$0xff]
    %v51 = vld [vmem:[#allocation2 + $0x40] sm:$0xff]
    %v52 = vld [vmem:[#allocation2 + $0x48] sm:$0xff]
    %v53 = vld [vmem:[#allocation2 + $0x50] sm:$0xff]
    %v54 = vld [vmem:[#allocation2 + $0x58] sm:$0xff]
    %v55 = vld [vmem:[#allocation2 + $0x60] sm:$0xff]
    %v56 = vld [vmem:[#allocation2 + $0x68] sm:$0xff]
    %v57 = vld [vmem:[#allocation2 + $0x70] sm:$0xff]
    %v58 = vld [vmem:[#allocation2 + $0x78] sm:$0xff]
    %v59 = vld [vmem:[%s0] sm:$0xff]
    %v60 = vld [vmem:[%s0 + $0x8] sm:$0xff]
    %v61 = vld [vmem:[%s0 + $0x10] sm:$0xff]
    %v62 = vld [vmem:[%s0 + $0x18] sm:$0xff]
    %v63 = vld [vmem:[%s0 + $0x20] sm:$0xff]
    %v64 = vld [vmem:[%s0 + $0x28] sm:$0xff]
    %v65 = vld [vmem:[%s0 + $0x30] sm:$0xff]
    %v66 = vld [vmem:[%s0 + $0x38] sm:$0xff]
    %v67 = vld [vmem:[%s0 + $0x40] sm:$0xff]
    %v68 = vld [vmem:[%s0 + $0x48] sm:$0xff]
    %v69 = vld [vmem:[%s0 + $0x50] sm:$0xff]
    %v70 = vld [vmem:[%s0 + $0x58] sm:$0xff]
    %v71 = vld [vmem:[%s0 + $0x60] sm:$0xff]
    %v72 = vld [vmem:[%s0 + $0x68] sm:$0xff]
    %v73 = vld [vmem:[%s0 + $0x70] sm:$0xff]
    %v74 = vld [vmem:[%s0 + $0x78] sm:$0xff]
    %v75 = vld [vmem:[%s1] sm:$0xff]
    %v76 = vld [vmem:[%s1 + $0x8] sm:$0xff]
    %v77 = vld [vmem:[%s1 + $0x10] sm:$0xff]
    %v78 = vld [vmem:[%s1 + $0x18] sm:$0xff]
    %vm79 = vcmask 261120
    %v81 = vsel %vm79, %v59, 0
    %v84 = vsel %vm79, %v60, 0
    %v87 = vsel %vm79, %v61, 0
    %v90 = vsel %vm79, %v62, 0
    %v93 = vsel %vm79, %v63, 0
    %v96 = vsel %vm79, %v64, 0
    %v99 = vsel %vm79, %v65, 0
    %v102 = vsel %vm79, %v66, 0
    %v105 = vsel %vm79, %v67, 0
    %v108 = vsel %vm79, %v68, 0
    %v111 = vsel %vm79, %v69, 0
    %v114 = vsel %vm79, %v70, 0
    %v117 = vsel %vm79, %v71, 0
    %v120 = vsel %vm79, %v72, 0
    %v123 = vsel %vm79, %v73, 0
    %v126 = vsel %vm79, %v74, 0
    %128 = vmatprep.subr.mxu0 0.0
    %129 = vmatpush1.msra.mxu0 %v75
    %130 = vmatprep.subr.mxu0 0.0
    %131 = vmatpush1.msra.mxu0 %v76
    %132 = vmatprep.subr.mxu0 0.0
    %133 = vmatpush1.msra.mxu0 %v77
    %134 = vmatprep.subr.mxu0 0.0
    %135 = vmatpush1.msra.mxu0 %v78
    %136 = vmatprep.subr.mxu0 0.0
    %137 = vmatpush1.msra.mxu0 0.0
    %138 = vmatprep.subr.mxu0 0.0
    %139 = vmatpush1.msra.mxu0 0.0
    %140 = vmatprep.subr.mxu0 0.0
    %141 = vmatpush1.msra.mxu0 0.0
    %142 = vmatprep.subr.mxu0 0.0
    %143 = vmatpush1.msra.mxu0 0.0
    %144 = vmatprep.subr.mxu0 0.0
    %145 = vmatpush1.msra.mxu0 0.0
    %146 = vmatprep.subr.mxu0 0.0
    %147 = vmatpush1.msra.mxu0 0.0
    %148 = vmatprep.subr.mxu0 0.0
    %149 = vmatpush1.msra.mxu0 0.0
    %150 = vmatprep.subr.mxu0 0.0
    %151 = vmatpush1.msra.mxu0 0.0
    %152 = vmatprep.subr.mxu0 0.0
    %153 = vmatpush1.msra.mxu0 0.0
    %154 = vmatprep.subr.mxu0 0.0
    %155 = vmatpush1.msra.mxu0 0.0
    %156 = vmatprep.subr.mxu0 0.0
    %157 = vmatpush1.msra.mxu0 0.0
    %158 = vmatprep.subr.mxu0 0.0
    %159 = vmatpush1.msra.mxu0 0.0
    %160 = vmatprep.subr.mxu0 0.0
    %161 = vmatpush1.msra.mxu0 0.0
    %162 = vmatprep.subr.mxu0 0.0
    %163 = vmatpush1.msra.mxu0 0.0
    %164 = vmatprep.subr.mxu0 0.0
    %165 = vmatpush1.msra.mxu0 0.0
    %166 = vmatprep.subr.mxu0 0.0
    %167 = vmatpush1.msra.mxu0 0.0
    %168 = vmatprep.subr.mxu0 0.0
    %169 = vmatpush1.msra.mxu0 0.0
    %170 = vmatprep.subr.mxu0 0.0
    %171 = vmatpush1.msra.mxu0 0.0
    %172 = vmatprep.subr.mxu0 0.0
    %173 = vmatpush1.msra.mxu0 0.0
    %174 = vmatprep.subr.mxu0 0.0
    %175 = vmatpush1.msra.mxu0 0.0
    %176 = vmatprep.subr.mxu0 0.0
    %177 = vmatpush1.msra.mxu0 0.0
    %178 = vmatprep.subr.mxu0 0.0
    %179 = vmatpush1.msra.mxu0 0.0
    %180 = vmatprep.subr.mxu0 0.0
    %181 = vmatpush1.msra.mxu0 0.0
    %182 = vmatprep.subr.mxu0 0.0
    %183 = vmatpush1.msra.mxu0 0.0
    %184 = vmatprep.subr.mxu0 0.0
    %185 = vmatpush1.msra.mxu0 0.0
    %186 = vmatprep.subr.mxu0 0.0
    %187 = vmatpush1.msra.mxu0 0.0
    %188 = vmatprep.subr.mxu0 0.0
    %189 = vmatpush1.msra.mxu0 0.0
    %190 = vmatprep.subr.mxu0 0.0
    %191 = vmatpush1.msra.mxu0 0.0
    %192 = vmatprep.mubr.f32.mxu0 0.0
    %193 = vmatmul.mubr.f32.gmra.mrb[0].mxu0 %v81
    %v194 = vpop.f32.mrb[0].mxu0
    %v195 = vadd.f32 0.0, %v194
    %v196 = vpop.f32.mrb[0].mxu0
    %197 = vmatprep.mubr.f32.mxu0 0.0
    %198 = vmatmul.mubr.f32.gmra.mrb[0].mxu0 %v84
    %v199 = vpop.f32.mrb[0].mxu0
    %v200 = vadd.f32 0.0, %v199
    %v201 = vpop.f32.mrb[0].mxu0
    %202 = vmatprep.mubr.f32.mxu0 0.0
    %203 = vmatmul.mubr.f32.gmra.mrb[0].mxu0 %v87
    %v204 = vpop.f32.mrb[0].mxu0
    %v205 = vadd.f32 0.0, %v204
    %v206 = vpop.f32.mrb[0].mxu0
    %207 = vmatprep.mubr.f32.mxu0 0.0
    %208 = vmatmul.mubr.f32.gmra.mrb[0].mxu0 %v90
    %v209 = vpop.f32.mrb[0].mxu0
    %v210 = vadd.f32 0.0, %v209
    %v211 = vpop.f32.mrb[0].mxu0
    %212 = vmatprep.mubr.f32.mxu0 0.0
    %213 = vmatmul.mubr.f32.gmra.mrb[0].mxu0 %v93
    %v214 = vpop.f32.mrb[0].mxu0
    %v215 = vadd.f32 0.0, %v214
    %v216 = vpop.f32.mrb[0].mxu0
    %217 = vmatprep.mubr.f32.mxu0 0.0
    %218 = vmatmul.mubr.f32.gmra.mrb[0].mxu0 %v96
    %v219 = vpop.f32.mrb[0].mxu0
    %v220 = vadd.f32 0.0, %v219
    %v221 = vpop.f32.mrb[0].mxu0
    %222 = vmatprep.mubr.f32.mxu0 0.0
    %223 = vmatmul.mubr.f32.gmra.mrb[0].mxu0 %v99
    %v224 = vpop.f32.mrb[0].mxu0
    %v225 = vadd.f32 0.0, %v224
    %v226 = vpop.f32.mrb[0].mxu0
    %227 = vmatprep.mubr.f32.mxu0 0.0
    %228 = vmatmul.mubr.f32.gmra.mrb[0].mxu0 %v102
    %v229 = vpop.f32.mrb[0].mxu0
    %v230 = vadd.f32 0.0, %v229
    %v231 = vpop.f32.mrb[0].mxu0
    %232 = vmatprep.mubr.f32.mxu0 0.0
    %233 = vmatmul.mubr.f32.gmra.mrb[0].mxu0 %v105
    %v234 = vpop.f32.mrb[0].mxu0
    %v235 = vadd.f32 0.0, %v234
    %v236 = vpop.f32.mrb[0].mxu0
    %237 = vmatprep.mubr.f32.mxu0 0.0
    %238 = vmatmul.mubr.f32.gmra.mrb[0].mxu0 %v108
    %v239 = vpop.f32.mrb[0].mxu0
    %v240 = vadd.f32 0.0, %v239
    %v241 = vpop.f32.mrb[0].mxu0
    %242 = vmatprep.mubr.f32.mxu0 0.0
    %243 = vmatmul.mubr.f32.gmra.mrb[0].mxu0 %v111
    %v244 = vpop.f32.mrb[0].mxu0
    %v245 = vadd.f32 0.0, %v244
    %v246 = vpop.f32.mrb[0].mxu0
    %247 = vmatprep.mubr.f32.mxu0 0.0
    %248 = vmatmul.mubr.f32.gmra.mrb[0].mxu0 %v114
    %v249 = vpop.f32.mrb[0].mxu0
    %v250 = vadd.f32 0.0, %v249
    %v251 = vpop.f32.mrb[0].mxu0
    %252 = vmatprep.mubr.f32.mxu0 0.0
    %253 = vmatmul.mubr.f32.gmra.mrb[0].mxu0 %v117
    %v254 = vpop.f32.mrb[0].mxu0
    %v255 = vadd.f32 0.0, %v254
    %v256 = vpop.f32.mrb[0].mxu0
    %257 = vmatprep.mubr.f32.mxu0 0.0
    %258 = vmatmul.mubr.f32.gmra.mrb[0].mxu0 %v120
    %v259 = vpop.f32.mrb[0].mxu0
    %v260 = vadd.f32 0.0, %v259
    %v261 = vpop.f32.mrb[0].mxu0
    %262 = vmatprep.mubr.f32.mxu0 0.0
    %263 = vmatmul.mubr.f32.gmra.mrb[0].mxu0 %v123
    %v264 = vpop.f32.mrb[0].mxu0
    %v265 = vadd.f32 0.0, %v264
    %v266 = vpop.f32.mrb[0].mxu0
    %267 = vmatprep.mubr.f32.mxu0 0.0
    %268 = vmatmul.mubr.f32.gmra.mrb[0].mxu0 %v126
    %v269 = vpop.f32.mrb[0].mxu0
    %v270 = vadd.f32 0.0, %v269
    %v271 = vpop.f32.mrb[0].mxu0
    %272 = vdwg.mxu0
    %v273 = vadd.f32 %v43, %v195
    %v274 = vadd.f32 %v44, %v200
    %v275 = vadd.f32 %v45, %v205
    %v276 = vadd.f32 %v46, %v210
    %v277 = vadd.f32 %v47, %v215
    %v278 = vadd.f32 %v48, %v220
    %v279 = vadd.f32 %v49, %v225
    %v280 = vadd.f32 %v50, %v230
    %v281 = vadd.f32 %v51, %v235
    %v282 = vadd.f32 %v52, %v240
    %v283 = vadd.f32 %v53, %v245
    %v284 = vadd.f32 %v54, %v250
    %v285 = vadd.f32 %v55, %v255
    %v286 = vadd.f32 %v56, %v260
    %v287 = vadd.f32 %v57, %v265
    %v288 = vadd.f32 %v58, %v270
    %289 = vst.msk [vmem:[#allocation2] sm:$0xff] %vm79, %v273
    %290 = vst.msk [vmem:[#allocation2 + $0x8] sm:$0xff] %vm79, %v274
    %291 = vst.msk [vmem:[#allocation2 + $0x10] sm:$0xff] %vm79, %v275
    %292 = vst.msk [vmem:[#allocation2 + $0x18] sm:$0xff] %vm79, %v276
    %293 = vst.msk [vmem:[#allocation2 + $0x20] sm:$0xff] %vm79, %v277
    %294 = vst.msk [vmem:[#allocation2 + $0x28] sm:$0xff] %vm79, %v278
    %295 = vst.msk [vmem:[#allocation2 + $0x30] sm:$0xff] %vm79, %v279
    %296 = vst.msk [vmem:[#allocation2 + $0x38] sm:$0xff] %vm79, %v280
    %297 = vst.msk [vmem:[#allocation2 + $0x40] sm:$0xff] %vm79, %v281
    %298 = vst.msk [vmem:[#allocation2 + $0x48] sm:$0xff] %vm79, %v282
    %299 = vst.msk [vmem:[#allocation2 + $0x50] sm:$0xff] %vm79, %v283
    %300 = vst.msk [vmem:[#allocation2 + $0x58] sm:$0xff] %vm79, %v284
    %301 = vst.msk [vmem:[#allocation2 + $0x60] sm:$0xff] %vm79, %v285
    %302 = vst.msk [vmem:[#allocation2 + $0x68] sm:$0xff] %vm79, %v286
    %303 = vst.msk [vmem:[#allocation2 + $0x70] sm:$0xff] %vm79, %v287
    %304 = vst.msk [vmem:[#allocation2 + $0x78] sm:$0xff] %vm79, %v288
    // Predicated region
    $region26: #{tpu_custom_call.1} parent=1 // pred_check
      %p305 = pneg %p22
    $region27: #{tpu_custom_call.1} parent=1 // pred_check_branch
      %307 = sbr.rel (%p305) target = $region29
    $region28: #{tpu_custom_call.1} parent=1 // pred_region
      %v308 = vld [vmem:[#allocation2] sm:$0xff]
      %v309 = vld [vmem:[#allocation2 + $0x8] sm:$0xff]
      %v310 = vld [vmem:[#allocation2 + $0x10] sm:$0xff]
      %v311 = vld [vmem:[#allocation2 + $0x18] sm:$0xff]
      %v312 = vld [vmem:[#allocation2 + $0x20] sm:$0xff]
      %v313 = vld [vmem:[#allocation2 + $0x28] sm:$0xff]
      %v314 = vld [vmem:[#allocation2 + $0x30] sm:$0xff]
      %v315 = vld [vmem:[#allocation2 + $0x38] sm:$0xff]
      %v316 = vld [vmem:[#allocation2 + $0x40] sm:$0xff]
      %v317 = vld [vmem:[#allocation2 + $0x48] sm:$0xff]
      %v318 = vld [vmem:[#allocation2 + $0x50] sm:$0xff]
      %v319 = vld [vmem:[#allocation2 + $0x58] sm:$0xff]
      %v320 = vld [vmem:[#allocation2 + $0x60] sm:$0xff]
      %v321 = vld [vmem:[#allocation2 + $0x68] sm:$0xff]
      %v322 = vld [vmem:[#allocation2 + $0x70] sm:$0xff]
      %v323 = vld [vmem:[#allocation2 + $0x78] sm:$0xff]
      %v324 = vld [vmem:[%s2] sm:$0x1]
      %v326 = vlaneseq
      %v327 = vshrl.u32 %v326, 7
      %v328 = vsub.s32 0, %v327
      %v329 = vrot.slane %v324, %v328
      %v331 = vadd.f32 %v308, %v329
      %v332 = vadd.f32 %v309, %v329
      %v333 = vadd.f32 %v310, %v329
      %v334 = vadd.f32 %v311, %v329
      %v335 = vadd.f32 %v312, %v329
      %v336 = vadd.f32 %v313, %v329
      %v337 = vadd.f32 %v314, %v329
      %v338 = vadd.f32 %v315, %v329
      %v339 = vadd.f32 %v316, %v329
      %v340 = vadd.f32 %v317, %v329
      %v341 = vadd.f32 %v318, %v329
      %v342 = vadd.f32 %v319, %v329
      %v343 = vadd.f32 %v320, %v329
      %v344 = vadd.f32 %v321, %v329
      %v345 = vadd.f32 %v322, %v329
      %v346 = vadd.f32 %v323, %v329
      %v347 = vmax.f32 %v331, 0.0
      %v348 = vmax.f32 %v332, 0.0
      %v349 = vmax.f32 %v333, 0.0
      %v350 = vmax.f32 %v334, 0.0
      %v351 = vmax.f32 %v335, 0.0
      %v352 = vmax.f32 %v336, 0.0
      %v353 = vmax.f32 %v337, 0.0
      %v354 = vmax.f32 %v338, 0.0
      %v355 = vmax.f32 %v339, 0.0
      %v356 = vmax.f32 %v340, 0.0
      %v357 = vmax.f32 %v341, 0.0
      %v358 = vmax.f32 %v342, 0.0
      %v359 = vmax.f32 %v343, 0.0
      %v360 = vmax.f32 %v344, 0.0
      %v361 = vmax.f32 %v345, 0.0
      %v362 = vmax.f32 %v346, 0.0
      %v363 = vld [vmem:[%s3] sm:$0x1]
      %v365 = vlaneseq
      %v366 = vshrl.u32 %v365, 7
      %v367 = vsub.s32 0, %v366
      %v368 = vrot.slane %v363, %v367
      %v370 = vmul.f32 %v347, %v368
      %v371 = vmul.f32 %v348, %v368
      %v372 = vmul.f32 %v349, %v368
      %v373 = vmul.f32 %v350, %v368
      %v374 = vmul.f32 %v351, %v368
      %v375 = vmul.f32 %v352, %v368
      %v376 = vmul.f32 %v353, %v368
      %v377 = vmul.f32 %v354, %v368
      %v378 = vmul.f32 %v355, %v368
      %v379 = vmul.f32 %v356, %v368
      %v380 = vmul.f32 %v357, %v368
      %v381 = vmul.f32 %v358, %v368
      %v382 = vmul.f32 %v359, %v368
      %v383 = vmul.f32 %v360, %v368
      %v384 = vmul.f32 %v361, %v368
      %v385 = vmul.f32 %v362, %v368
      %v386 = vsel %vm79, %v370, 0.0
      %387 = vadd.xlane.f32.xlu0 %v386
      %v388 = vpop.xlane.xlu0 %387
      %v389 = vsel %vm79, %v371, 0.0
      %390 = vadd.xlane.f32.xlu0 %v389
      %v391 = vpop.xlane.xlu0 %390
      %v392 = vsel %vm79, %v372, 0.0
      %393 = vadd.xlane.f32.xlu0 %v392
      %v394 = vpop.xlane.xlu0 %393
      %v395 = vsel %vm79, %v373, 0.0
      %396 = vadd.xlane.f32.xlu0 %v395
      %v397 = vpop.xlane.xlu0 %396
      %v398 = vsel %vm79, %v374, 0.0
      %399 = vadd.xlane.f32.xlu0 %v398
      %v400 = vpop.xlane.xlu0 %399
      %v401 = vsel %vm79, %v375, 0.0
      %402 = vadd.xlane.f32.xlu0 %v401
      %v403 = vpop.xlane.xlu0 %402
      %v404 = vsel %vm79, %v376, 0.0
      %405 = vadd.xlane.f32.xlu0 %v404
      %v406 = vpop.xlane.xlu0 %405
      %v407 = vsel %vm79, %v377, 0.0
      %408 = vadd.xlane.f32.xlu0 %v407
      %v409 = vpop.xlane.xlu0 %408
      %v410 = vsel %vm79, %v378, 0.0
      %411 = vadd.xlane.f32.xlu0 %v410
      %v412 = vpop.xlane.xlu0 %411
      %v413 = vsel %vm79, %v379, 0.0
      %414 = vadd.xlane.f32.xlu0 %v413
      %v415 = vpop.xlane.xlu0 %414
      %v416 = vsel %vm79, %v380, 0.0
      %417 = vadd.xlane.f32.xlu0 %v416
      %v418 = vpop.xlane.xlu0 %417
      %v419 = vsel %vm79, %v381, 0.0
      %420 = vadd.xlane.f32.xlu0 %v419
      %v421 = vpop.xlane.xlu0 %420
      %v422 = vsel %vm79, %v382, 0.0
      %423 = vadd.xlane.f32.xlu0 %v422
      %v424 = vpop.xlane.xlu0 %423
      %v425 = vsel %vm79, %v383, 0.0
      %426 = vadd.xlane.f32.xlu0 %v425
      %v427 = vpop.xlane.xlu0 %426
      %v428 = vsel %vm79, %v384, 0.0
      %429 = vadd.xlane.f32.xlu0 %v428
      %v430 = vpop.xlane.xlu0 %429
      %v431 = vsel %vm79, %v385, 0.0
      %432 = vadd.xlane.f32.xlu0 %v431
      %v433 = vpop.xlane.xlu0 %432
      %v434 = vadd.f32 %v388, 0.0
      %v435 = vadd.f32 %v391, 0.0
      %v436 = vadd.f32 %v394, 0.0
      %v437 = vadd.f32 %v397, 0.0
      %v438 = vadd.f32 %v400, 0.0
      %v439 = vadd.f32 %v403, 0.0
      %v440 = vadd.f32 %v406, 0.0
      %v441 = vadd.f32 %v409, 0.0
      %v442 = vadd.f32 %v412, 0.0
      %v443 = vadd.f32 %v415, 0.0
      %v444 = vadd.f32 %v418, 0.0
      %v445 = vadd.f32 %v421, 0.0
      %v446 = vadd.f32 %v424, 0.0
      %v447 = vadd.f32 %v427, 0.0
      %v448 = vadd.f32 %v430, 0.0
      %v449 = vadd.f32 %v433, 0.0
      %s450 = sld [smem:[#allocation3]]
      %v451 = vstv %s450
      %v452 = vadd.f32 %v434, %v451
      %v453 = vadd.f32 %v435, %v451
      %v454 = vadd.f32 %v436, %v451
      %v455 = vadd.f32 %v437, %v451
      %v456 = vadd.f32 %v438, %v451
      %v457 = vadd.f32 %v439, %v451
      %v458 = vadd.f32 %v440, %v451
      %v459 = vadd.f32 %v441, %v451
      %v460 = vadd.f32 %v442, %v451
      %v461 = vadd.f32 %v443, %v451
      %v462 = vadd.f32 %v444, %v451
      %v463 = vadd.f32 %v445, %v451
      %v464 = vadd.f32 %v446, %v451
      %v465 = vadd.f32 %v447, %v451
      %v466 = vadd.f32 %v448, %v451
      %v467 = vadd.f32 %v449, %v451
      %v484 = vlaneseq
      %v485 = vand.u32 %v484, 127
      %v486 = vlaneseq
      %v487 = vshrl.u32 %v486, 7
      %v488 = vsub.s32 %v485, %v487
      %v489 = vrot.slane %v452, %v488
      %v490 = vadd.s32 %v485, 4294967288
      %v491 = vlaneseq
      %v492 = vshrl.u32 %v491, 7
      %v493 = vsub.s32 %v490, %v492
      %v494 = vrot.slane %v453, %v493
      %vm495 = vcmask 130112
      %v496 = vsel %vm495, %v494, %v489
      %v497 = vadd.s32 %v485, 4294967280
      %v498 = vlaneseq
      %v499 = vshrl.u32 %v498, 7
      %v500 = vsub.s32 %v497, %v499
      %v501 = vrot.slane %v454, %v500
      %vm502 = vcmask 195712
      %v503 = vsel %vm502, %v501, %v496
      %v504 = vadd.s32 %v485, 4294967272
      %v505 = vlaneseq
      %v506 = vshrl.u32 %v505, 7
      %v507 = vsub.s32 %v504, %v506
      %v508 = vrot.slane %v455, %v507
      %vm509 = vcmask 261312
      %v510 = vsel %vm509, %v508, %v503
      %v511 = vadd.s32 %v485, 4294967264
      %v512 = vlaneseq
      %v513 = vshrl.u32 %v512, 7
      %v514 = vsub.s32 %v511, %v513
      %v515 = vrot.slane %v456, %v514
      %vm516 = vcmask 326912
      %v517 = vsel %vm516, %v515, %v510
      %v518 = vadd.s32 %v485, 4294967256
      %v519 = vlaneseq
      %v520 = vshrl.u32 %v519, 7
      %v521 = vsub.s32 %v518, %v520
      %v522 = vrot.slane %v457, %v521
      %vm523 = vcmask 392512
      %v524 = vsel %vm523, %v522, %v517
      %v525 = vadd.s32 %v485, 4294967248
      %v526 = vlaneseq
      %v527 = vshrl.u32 %v526, 7
      %v528 = vsub.s32 %v525, %v527
      %v529 = vrot.slane %v458, %v528
      %vm530 = vcmask 458112
      %v531 = vsel %vm530, %v529, %v524
      %v532 = vadd.s32 %v485, 4294967240
      %v533 = vlaneseq
      %v534 = vshrl.u32 %v533, 7
      %v535 = vsub.s32 %v532, %v534
      %v536 = vrot.slane %v459, %v535
      %vm537 = vcmask 523712
      %v538 = vsel %vm537, %v536, %v531
      %v539 = vadd.s32 %v485, 4294967232
      %v540 = vlaneseq
      %v541 = vshrl.u32 %v540, 7
      %v542 = vsub.s32 %v539, %v541
      %v543 = vrot.slane %v460, %v542
      %vm544 = vcmask 589312
      %v545 = vsel %vm544, %v543, %v538
      %v546 = vadd.s32 %v485, 4294967224
      %v547 = vlaneseq
      %v548 = vshrl.u32 %v547, 7
      %v549 = vsub.s32 %v546, %v548
      %v550 = vrot.slane %v461, %v549
      %vm551 = vcmask 654912
      %v552 = vsel %vm551, %v550, %v545
      %v553 = vadd.s32 %v485, 4294967216
      %v554 = vlaneseq
      %v555 = vshrl.u32 %v554, 7
      %v556 = vsub.s32 %v553, %v555
      %v557 = vrot.slane %v462, %v556
      %vm558 = vcmask 720512
      %v559 = vsel %vm558, %v557, %v552
      %v560 = vadd.s32 %v485, 4294967208
      %v561 = vlaneseq
      %v562 = vshrl.u32 %v561, 7
      %v563 = vsub.s32 %v560, %v562
      %v564 = vrot.slane %v463, %v563
      %vm565 = vcmask 786112
      %v566 = vsel %vm565, %v564, %v559
      %v567 = vadd.s32 %v485, 4294967200
      %v568 = vlaneseq
      %v569 = vshrl.u32 %v568, 7
      %v570 = vsub.s32 %v567, %v569
      %v571 = vrot.slane %v464, %v570
      %vm572 = vcmask 851712
      %v573 = vsel %vm572, %v571, %v566
      %v574 = vadd.s32 %v485, 4294967192
      %v575 = vlaneseq
      %v576 = vshrl.u32 %v575, 7
      %v577 = vsub.s32 %v574, %v576
      %v578 = vrot.slane %v465, %v577
      %vm579 = vcmask 917312
      %v580 = vsel %vm579, %v578, %v573
      %v581 = vadd.s32 %v485, 4294967184
      %v582 = vlaneseq
      %v583 = vshrl.u32 %v582, 7
      %v584 = vsub.s32 %v581, %v583
      %v585 = vrot.slane %v466, %v584
      %vm586 = vcmask 982912
      %v587 = vsel %vm586, %v585, %v580
      %v588 = vadd.s32 %v485, 4294967176
      %v589 = vlaneseq
      %v590 = vshrl.u32 %v589, 7
      %v591 = vsub.s32 %v588, %v590
      %v592 = vrot.slane %v467, %v591
      %vm593 = vcmask 1048512
      %v594 = vsel %vm593, %v592, %v587
      %596 = vst [vmem:[#allocation4] sm:$0x1] %v594
    $region29: #{tpu_custom_call.1} parent=1 // pred_fallthru
      _
    // Predicated region
    $region30: #{tpu_custom_call.1} parent=1 // pred_check
      _
    $region31: #{tpu_custom_call.1} parent=1 // pred_check_branch
      %598 = sbr.rel (0) target = $region33
    $region32: #{tpu_custom_call.1} parent=1 // pred_region
      %s600 = ssub.s32 16, 16
      %601 = vsyncadd [#allocation5], %s600
      %s603 = sshll.u32 [#allocation4], 4
      %s604 = int_to_ptr.vmem [resolvable:$true] %s603
      %606 = dma.vmem_to_hbm [thread:$0]  %s604, 16, %s5, [#allocation5]
    $region33: #{tpu_custom_call.1} parent=1 // pred_fallthru
      _
    // Predicated region
    $region34: #{tpu_custom_call.1} parent=1 // pred_check
      _
    $region35: #{tpu_custom_call.1} parent=1 // pred_check_branch
      %608 = sbr.rel (0) target = $region37
    $region36: #{tpu_custom_call.1} parent=1 // pred_region
      %609 = dma.done [#allocation5], 16
    $region37: #{tpu_custom_call.1} parent=1 // pred_fallthru
      _
    %610 = vsyncpa [#allocation5], 1

</llo_original>
